<compile_context>
chip_gen: v5e
topology: v5e:2x2
jax: 0.10.0
libtpu: 0.0.40
codegen_flags: <defaults>
</compile_context>

<pallas_src>
import functools

import jax
import jax.numpy as jnp
from jax import lax
from jax.experimental import pallas as pl
from jax.experimental.pallas import tpu as pltpu


def _round_up(x, m):
    return (x + m - 1) // m * m


def _pick_bt(n, per_img_lanes, lane_cap=8 * 1024):
    """Largest divisor of n whose stacked frame still has a modest lane extent."""
    bt = 1
    for d in range(1, n + 1):
        if n % d == 0 and d * per_img_lanes <= lane_cap:
            bt = d
    return bt


def _basic_block_kernel(mask_ref, x_ref, w1_ref, b1_ref, w2_ref, b2_ref,
                        out_ref, frame2,
                        *, P, OFF, S, LM, LT, Cmid, Cout):
    # ---------------- conv1: 9 accumulated MXU matmuls (one per 3x3 tap) -------------
    # Tap (kh, kw) of output lane M reads input-frame lane OFF + kh*P + kw + M, so each
    # tap operand is a contiguous lane window of the pre-padded frame (no gathers).
    y1 = None
    for kh in range(3):
        for kw in range(3):
            t = kh * 3 + kw
            s0 = OFF + kh * P + kw
            slab = x_ref[0, :, s0:s0 + LM].astype(jnp.bfloat16)     # (Cin, LM)
            d = jnp.dot(w1_ref[t], slab, preferred_element_type=jnp.float32)
            y1 = d if y1 is None else y1 + d                         # (Cmid, LM) f32
    y1 = jnp.maximum(y1 + b1_ref[...], 0.0)          # BN1 (folded) bias + ReLU
    y1 = y1 * mask_ref[...]                          # zero wrap-around / inter-image lanes

    # ------------- conv2 input frame: halo-only zeroing + one aligned store ----------
    frame2[:, 0:S] = jnp.zeros((Cmid, S), jnp.bfloat16)
    if LT > S + LM:
        frame2[:, S + LM:LT] = jnp.zeros((Cmid, LT - S - LM), jnp.bfloat16)
    frame2[:, S:S + LM] = y1.astype(jnp.bfloat16)    # 128-lane-aligned bulk store

    # ---------------- conv2: same 9-tap accumulated matmul ---------------------------
    y2 = None
    for kh in range(3):
        for kw in range(3):
            t = kh * 3 + kw
            s0 = OFF + kh * P + kw
            d = jnp.dot(w2_ref[t], frame2[:, s0:s0 + LM],
                        preferred_element_type=jnp.float32)
            y2 = d if y2 is None else y2 + d                         # (Cout, LM) f32
    y2 = y2 + b2_ref[...]                            # BN2 (folded) bias
    y2 = y2 + x_ref[0, :, S:S + LM]                  # residual identity, exact f32

    out_ref[0] = jnp.maximum(y2, 0.0)                # lane-dense (Cout, LM) store


def _fold_bn(gamma, beta, mean, var, eps=1e-5):
    scale = gamma / jnp.sqrt(var + eps)
    bias = beta - mean * scale
    return scale.astype(jnp.float32), bias.astype(jnp.float32)


def basic_block_forward(x_nchw, params):
    """Matches BasicBlock.forward with stride=1, downsample=None (eval-mode BN)."""
    x = jnp.transpose(x_nchw, (0, 2, 3, 1)).astype(jnp.float32)     # NCHW -> NHWC
    N, H, W, Cin = x.shape
    Cmid = params["conv1_w"].shape[0]
    Cout = params["conv2_w"].shape[0]
    assert Cin == Cout, "downsample=None requires in_channels == out_channels"

    P = W + 2                       # lane period of one padded image row
    S = 128                         # lane offset of real data inside a frame (aligned)
    OFF = S - P - 1                 # lane offset of padded position (0, 0)
    per_img = (H + 2) * P           # lanes occupied by one padded image

    Bt = _pick_bt(N, per_img)       # images folded into one matmul lane extent
    G = N // Bt
    LM = Bt * per_img               # matmul N / output lane extent per grid step
    LT = _round_up(OFF + 2 * P + 2 + LM, 128)   # total frame lanes (tap slabs in-bounds)

    s1, b1 = _fold_bn(params["bn1_gamma"], params["bn1_beta"],
                      params["bn1_mean"], params["bn1_var"])
    s2, b2 = _fold_bn(params["bn2_gamma"], params["bn2_beta"],
                      params["bn2_mean"], params["bn2_var"])

    # (Cout,Cin,3,3) -> (3,3,Cout,Cin) -> (9,Cout,Cin); fold BN scale; bf16 for the MXU.
    w1 = (jnp.transpose(params["conv1_w"], (2, 3, 0, 1)).reshape(9, Cmid, Cin)
          * s1[None, :, None]).astype(jnp.bfloat16)
    w2 = (jnp.transpose(params["conv2_w"], (2, 3, 0, 1)).reshape(9, Cout, Cmid)
          * s2[None, :, None]).astype(jnp.bfloat16)
    b1 = b1.reshape(Cmid, 1)
    b2 = b2.reshape(Cout, 1)

    # Zero-haloed, channels-in-sublanes frames, built once here and DMA'd by Pallas.
    xp = jnp.pad(x, ((0, 0), (1, 1), (1, 1), (0, 0)))               # (N, H+2, P, Cin)
    xg = xp.reshape(G, Bt * per_img, Cin)                           # lane order (b,hp,wp)
    xf = jnp.transpose(xg, (0, 2, 1))                               # (G, Cin, Bt*per_img)
    xf = jnp.pad(xf, ((0, 0), (0, 0), (OFF, LT - OFF - LM)))        # (G, Cin, LT)

    # Precomputed 0/1 mask: zero lanes that are wrap-around columns or inter-image rows.
    mi = jnp.arange(LM, dtype=jnp.int32)
    mask = (((mi % P) < W) & (((mi // P) % (H + 2)) < H)).astype(jnp.float32)
    mask = mask.reshape(1, LM)

    kernel = functools.partial(_basic_block_kernel, P=P, OFF=OFF, S=S, LM=LM, LT=LT,
                               Cmid=Cmid, Cout=Cout)

    out = pl.pallas_call(
        kernel,
        out_shape=jax.ShapeDtypeStruct((G, Cout, LM), jnp.float32),
        grid_spec=pltpu.PrefetchScalarGridSpec(
            num_scalar_prefetch=0,
            grid=(G,),
            in_specs=[
                pl.BlockSpec((1, LM), lambda g: (0, 0)),             # mask (constant)
                pl.BlockSpec((1, Cin, LT), lambda g: (g, 0, 0)),     # padded input frames
                pl.BlockSpec((9, Cmid, Cin), lambda g: (0, 0, 0)),   # conv1 weights
                pl.BlockSpec((Cmid, 1), lambda g: (0, 0)),           # bn1 bias
                pl.BlockSpec((9, Cout, Cmid), lambda g: (0, 0, 0)),  # conv2 weights
                pl.BlockSpec((Cout, 1), lambda g: (0, 0)),           # bn2 bias
            ],
            out_specs=pl.BlockSpec((1, Cout, LM), lambda g: (g, 0, 0)),
            scratch_shapes=[
                pltpu.VMEM((Cmid, LT), jnp.bfloat16),                # conv2 input frame
            ],
        ),
        compiler_params=pltpu.CompilerParams(
            dimension_semantics=("parallel",),
            vmem_limit_bytes=32 * 1024 * 1024,
        ),
    )(mask, xf, w1, b1, w2, b2)

    # Un-flatten the lane axis and drop halo / garbage lanes -> already NCHW order.
    out = out.reshape(G, Cout, Bt, H + 2, P)[:, :, :, :H, :W]
    out = jnp.transpose(out, (0, 2, 1, 3, 4)).reshape(N, Cout, H, W)
    return out


def _reference_forward(x_nchw, params):
    """Plain-JAX f32 reference (lax.conv) for correctness check."""
    def conv(x, w):
        return lax.conv_general_dilated(
            x, w, window_strides=(1, 1), padding=((1, 1), (1, 1)),
            dimension_numbers=("NCHW", "OIHW", "NCHW"))

    def bn(x, g, b, m, v, eps=1e-5):
        g = g.reshape(1, -1, 1, 1); b = b.reshape(1, -1, 1, 1)
        m = m.reshape(1, -1, 1, 1); v = v.reshape(1, -1, 1, 1)
        return (x - m) / jnp.sqrt(v + eps) * g + b

    identity = x_nchw
    out = jax.nn.relu(bn(conv(x_nchw, params["conv1_w"]),
                         params["bn1_gamma"], params["bn1_beta"],
                         params["bn1_mean"], params["bn1_var"]))
    out = bn(conv(out, params["conv2_w"]),
             params["bn2_gamma"], params["bn2_beta"],
             params["bn2_mean"], params["bn2_var"])
    return jax.nn.relu(out + identity)


if __name__ == "__main__":
    N, C, H, W = 2, 4, 16, 16   # in_channels == out_channels, stride=1, downsample=None
    key = jax.random.PRNGKey(0)
    keys = jax.random.split(key, 11)

    params = {
        "conv1_w": 0.1 * jax.random.normal(keys[0], (C, C, 3, 3), jnp.float32),
        "conv2_w": 0.1 * jax.random.normal(keys[1], (C, C, 3, 3), jnp.float32),
        "bn1_gamma": 1.0 + 0.1 * jax.random.normal(keys[2], (C,), jnp.float32),
        "bn1_beta": 0.1 * jax.random.normal(keys[3], (C,), jnp.float32),
        "bn1_mean": 0.1 * jax.random.normal(keys[4], (C,), jnp.float32),
        "bn1_var": jnp.abs(1.0 + 0.1 * jax.random.normal(keys[5], (C,), jnp.float32)),
        "bn2_gamma": 1.0 + 0.1 * jax.random.normal(keys[6], (C,), jnp.float32),
        "bn2_beta": 0.1 * jax.random.normal(keys[7], (C,), jnp.float32),
        "bn2_mean": 0.1 * jax.random.normal(keys[8], (C,), jnp.float32),
        "bn2_var": jnp.abs(1.0 + 0.1 * jax.random.normal(keys[9], (C,), jnp.float32)),
    }
    x = jax.random.normal(keys[10], (N, C, H, W), jnp.float32)

    out = jax.block_until_ready(basic_block_forward(x, params))
    ref = jax.block_until_ready(_reference_forward(x, params))

    assert out.shape == (N, C, H, W)
    # bf16 MXU operands / bf16 conv1 activation (f32 accumulation & f32 residual)
    # -> relaxed tolerance vs the f32 reference.
    assert jnp.allclose(out, ref, atol=5e-2, rtol=5e-2), float(jnp.max(jnp.abs(out - ref)))
    print("KERNEL_OK")
</pallas_src>

<mosaic_0001>
module attributes {stable_mosaic.version = 11 : i64} {
  func.func @_basic_block_kernel(%arg0: i32, %arg1: memref<1x648xf32, #tpu.memory_space<vmem>>, %arg2: memref<1x4x896xf32, #tpu.memory_space<vmem>>, %arg3: memref<9x4x4xbf16, #tpu.memory_space<vmem>>, %arg4: memref<4x1xf32, #tpu.memory_space<vmem>>, %arg5: memref<9x4x4xbf16, #tpu.memory_space<vmem>>, %arg6: memref<4x1xf32, #tpu.memory_space<vmem>>, %arg7: memref<1x4x648xf32, #tpu.memory_space<vmem>>, %arg8: memref<4x896xbf16, #tpu.memory_space<vmem>>) attributes {dimension_semantics = [#tpu.dimension_semantics<parallel>], iteration_bounds = array<i64: 1>, scalar_prefetch = 0 : i64, scratch_operands = 1 : i64, tpu.core_type = #tpu.core_type<tc>, window_params = [{pipeline_mode = #tpu.pipeline_mode<synchronous>, transform_indices = @transform_0, window_bounds = array<i64: 1, 648>}, {transform_indices = @transform_1, window_bounds = array<i64: 1, 4, 896>}, {pipeline_mode = #tpu.pipeline_mode<synchronous>, transform_indices = @transform_2, window_bounds = array<i64: 9, 4, 4>}, {pipeline_mode = #tpu.pipeline_mode<synchronous>, transform_indices = @transform_3, window_bounds = array<i64: 4, 1>}, {pipeline_mode = #tpu.pipeline_mode<synchronous>, transform_indices = @transform_4, window_bounds = array<i64: 9, 4, 4>}, {pipeline_mode = #tpu.pipeline_mode<synchronous>, transform_indices = @transform_5, window_bounds = array<i64: 4, 1>}, {transform_indices = @transform_6, window_bounds = array<i64: 1, 4, 648>}]} {
    %c0 = arith.constant 0 : index
    %c0_0 = arith.constant 0 : index
    %c109 = arith.constant 109 : index
    %0 = vector.load %arg2[%c0, %c0_0, %c109] : memref<1x4x896xf32, #tpu.memory_space<vmem>>, vector<1x4x648xf32>
    %1 = vector.shape_cast %0 : vector<1x4x648xf32> to vector<4x648xf32>
    %2 = arith.truncf %1 : vector<4x648xf32> to vector<4x648xbf16>
    %c0_1 = arith.constant 0 : index
    %c0_2 = arith.constant 0 : index
    %c0_3 = arith.constant 0 : index
    %3 = vector.load %arg3[%c0_1, %c0_2, %c0_3] : memref<9x4x4xbf16, #tpu.memory_space<vmem>>, vector<1x4x4xbf16>
    %4 = vector.shape_cast %3 : vector<1x4x4xbf16> to vector<4x4xbf16>
    %cst = arith.constant dense<0.000000e+00> : vector<4x648xf32>
    %5 = tpu.matmul %4, %2, %cst {dimension_numbers = #tpu.dot_dimension_numbers<[1], [0], [0], [1], [0, 0, 1, 1], [], []>} : vector<4x4xbf16>, vector<4x648xbf16>, vector<4x648xf32> -> vector<4x648xf32>
    %c0_4 = arith.constant 0 : index
    %c0_5 = arith.constant 0 : index
    %c110 = arith.constant 110 : index
    %6 = vector.load %arg2[%c0_4, %c0_5, %c110] : memref<1x4x896xf32, #tpu.memory_space<vmem>>, vector<1x4x648xf32>
    %7 = vector.shape_cast %6 : vector<1x4x648xf32> to vector<4x648xf32>
    %8 = arith.truncf %7 : vector<4x648xf32> to vector<4x648xbf16>
    %c1 = arith.constant 1 : index
    %c0_6 = arith.constant 0 : index
    %c0_7 = arith.constant 0 : index
    %9 = vector.load %arg3[%c1, %c0_6, %c0_7] : memref<9x4x4xbf16, #tpu.memory_space<vmem>>, vector<1x4x4xbf16>
    %10 = vector.shape_cast %9 : vector<1x4x4xbf16> to vector<4x4xbf16>
    %cst_8 = arith.constant dense<0.000000e+00> : vector<4x648xf32>
    %11 = tpu.matmul %10, %8, %cst_8 {dimension_numbers = #tpu.dot_dimension_numbers<[1], [0], [0], [1], [0, 0, 1, 1], [], []>} : vector<4x4xbf16>, vector<4x648xbf16>, vector<4x648xf32> -> vector<4x648xf32>
    %12 = arith.addf %5, %11 : vector<4x648xf32>
    %c0_9 = arith.constant 0 : index
    %c0_10 = arith.constant 0 : index
    %c111 = arith.constant 111 : index
    %13 = vector.load %arg2[%c0_9, %c0_10, %c111] : memref<1x4x896xf32, #tpu.memory_space<vmem>>, vector<1x4x648xf32>
    %14 = vector.shape_cast %13 : vector<1x4x648xf32> to vector<4x648xf32>
    %15 = arith.truncf %14 : vector<4x648xf32> to vector<4x648xbf16>
    %c2 = arith.constant 2 : index
    %c0_11 = arith.constant 0 : index
    %c0_12 = arith.constant 0 : index
    %16 = vector.load %arg3[%c2, %c0_11, %c0_12] : memref<9x4x4xbf16, #tpu.memory_space<vmem>>, vector<1x4x4xbf16>
    %17 = vector.shape_cast %16 : vector<1x4x4xbf16> to vector<4x4xbf16>
    %cst_13 = arith.constant dense<0.000000e+00> : vector<4x648xf32>
    %18 = tpu.matmul %17, %15, %cst_13 {dimension_numbers = #tpu.dot_dimension_numbers<[1], [0], [0], [1], [0, 0, 1, 1], [], []>} : vector<4x4xbf16>, vector<4x648xbf16>, vector<4x648xf32> -> vector<4x648xf32>
    %19 = arith.addf %12, %18 : vector<4x648xf32>
    %c0_14 = arith.constant 0 : index
    %c0_15 = arith.constant 0 : index
    %c127 = arith.constant 127 : index
    %20 = vector.load %arg2[%c0_14, %c0_15, %c127] : memref<1x4x896xf32, #tpu.memory_space<vmem>>, vector<1x4x648xf32>
    %21 = vector.shape_cast %20 : vector<1x4x648xf32> to vector<4x648xf32>
    %22 = arith.truncf %21 : vector<4x648xf32> to vector<4x648xbf16>
    %c3 = arith.constant 3 : index
    %c0_16 = arith.constant 0 : index
    %c0_17 = arith.constant 0 : index
    %23 = vector.load %arg3[%c3, %c0_16, %c0_17] : memref<9x4x4xbf16, #tpu.memory_space<vmem>>, vector<1x4x4xbf16>
    %24 = vector.shape_cast %23 : vector<1x4x4xbf16> to vector<4x4xbf16>
    %cst_18 = arith.constant dense<0.000000e+00> : vector<4x648xf32>
    %25 = tpu.matmul %24, %22, %cst_18 {dimension_numbers = #tpu.dot_dimension_numbers<[1], [0], [0], [1], [0, 0, 1, 1], [], []>} : vector<4x4xbf16>, vector<4x648xbf16>, vector<4x648xf32> -> vector<4x648xf32>
    %26 = arith.addf %19, %25 : vector<4x648xf32>
    %c0_19 = arith.constant 0 : index
    %c0_20 = arith.constant 0 : index
    %c128 = arith.constant 128 : index
    %27 = vector.load %arg2[%c0_19, %c0_20, %c128] : memref<1x4x896xf32, #tpu.memory_space<vmem>>, vector<1x4x648xf32>
    %28 = vector.shape_cast %27 : vector<1x4x648xf32> to vector<4x648xf32>
    %29 = arith.truncf %28 : vector<4x648xf32> to vector<4x648xbf16>
    %c4 = arith.constant 4 : index
    %c0_21 = arith.constant 0 : index
    %c0_22 = arith.constant 0 : index
    %30 = vector.load %arg3[%c4, %c0_21, %c0_22] : memref<9x4x4xbf16, #tpu.memory_space<vmem>>, vector<1x4x4xbf16>
    %31 = vector.shape_cast %30 : vector<1x4x4xbf16> to vector<4x4xbf16>
    %cst_23 = arith.constant dense<0.000000e+00> : vector<4x648xf32>
    %32 = tpu.matmul %31, %29, %cst_23 {dimension_numbers = #tpu.dot_dimension_numbers<[1], [0], [0], [1], [0, 0, 1, 1], [], []>} : vector<4x4xbf16>, vector<4x648xbf16>, vector<4x648xf32> -> vector<4x648xf32>
    %33 = arith.addf %26, %32 : vector<4x648xf32>
    %c0_24 = arith.constant 0 : index
    %c0_25 = arith.constant 0 : index
    %c129 = arith.constant 129 : index
    %34 = vector.load %arg2[%c0_24, %c0_25, %c129] : memref<1x4x896xf32, #tpu.memory_space<vmem>>, vector<1x4x648xf32>
    %35 = vector.shape_cast %34 : vector<1x4x648xf32> to vector<4x648xf32>
    %36 = arith.truncf %35 : vector<4x648xf32> to vector<4x648xbf16>
    %c5 = arith.constant 5 : index
    %c0_26 = arith.constant 0 : index
    %c0_27 = arith.constant 0 : index
    %37 = vector.load %arg3[%c5, %c0_26, %c0_27] : memref<9x4x4xbf16, #tpu.memory_space<vmem>>, vector<1x4x4xbf16>
    %38 = vector.shape_cast %37 : vector<1x4x4xbf16> to vector<4x4xbf16>
    %cst_28 = arith.constant dense<0.000000e+00> : vector<4x648xf32>
    %39 = tpu.matmul %38, %36, %cst_28 {dimension_numbers = #tpu.dot_dimension_numbers<[1], [0], [0], [1], [0, 0, 1, 1], [], []>} : vector<4x4xbf16>, vector<4x648xbf16>, vector<4x648xf32> -> vector<4x648xf32>
    %40 = arith.addf %33, %39 : vector<4x648xf32>
    %c0_29 = arith.constant 0 : index
    %c0_30 = arith.constant 0 : index
    %c145 = arith.constant 145 : index
    %41 = vector.load %arg2[%c0_29, %c0_30, %c145] : memref<1x4x896xf32, #tpu.memory_space<vmem>>, vector<1x4x648xf32>
    %42 = vector.shape_cast %41 : vector<1x4x648xf32> to vector<4x648xf32>
    %43 = arith.truncf %42 : vector<4x648xf32> to vector<4x648xbf16>
    %c6 = arith.constant 6 : index
    %c0_31 = arith.constant 0 : index
    %c0_32 = arith.constant 0 : index
    %44 = vector.load %arg3[%c6, %c0_31, %c0_32] : memref<9x4x4xbf16, #tpu.memory_space<vmem>>, vector<1x4x4xbf16>
    %45 = vector.shape_cast %44 : vector<1x4x4xbf16> to vector<4x4xbf16>
    %cst_33 = arith.constant dense<0.000000e+00> : vector<4x648xf32>
    %46 = tpu.matmul %45, %43, %cst_33 {dimension_numbers = #tpu.dot_dimension_numbers<[1], [0], [0], [1], [0, 0, 1, 1], [], []>} : vector<4x4xbf16>, vector<4x648xbf16>, vector<4x648xf32> -> vector<4x648xf32>
    %47 = arith.addf %40, %46 : vector<4x648xf32>
    %c0_34 = arith.constant 0 : index
    %c0_35 = arith.constant 0 : index
    %c146 = arith.constant 146 : index
    %48 = vector.load %arg2[%c0_34, %c0_35, %c146] : memref<1x4x896xf32, #tpu.memory_space<vmem>>, vector<1x4x648xf32>
    %49 = vector.shape_cast %48 : vector<1x4x648xf32> to vector<4x648xf32>
    %50 = arith.truncf %49 : vector<4x648xf32> to vector<4x648xbf16>
    %c7 = arith.constant 7 : index
    %c0_36 = arith.constant 0 : index
    %c0_37 = arith.constant 0 : index
    %51 = vector.load %arg3[%c7, %c0_36, %c0_37] : memref<9x4x4xbf16, #tpu.memory_space<vmem>>, vector<1x4x4xbf16>
    %52 = vector.shape_cast %51 : vector<1x4x4xbf16> to vector<4x4xbf16>
    %cst_38 = arith.constant dense<0.000000e+00> : vector<4x648xf32>
    %53 = tpu.matmul %52, %50, %cst_38 {dimension_numbers = #tpu.dot_dimension_numbers<[1], [0], [0], [1], [0, 0, 1, 1], [], []>} : vector<4x4xbf16>, vector<4x648xbf16>, vector<4x648xf32> -> vector<4x648xf32>
    %54 = arith.addf %47, %53 : vector<4x648xf32>
    %c0_39 = arith.constant 0 : index
    %c0_40 = arith.constant 0 : index
    %c147 = arith.constant 147 : index
    %55 = vector.load %arg2[%c0_39, %c0_40, %c147] : memref<1x4x896xf32, #tpu.memory_space<vmem>>, vector<1x4x648xf32>
    %56 = vector.shape_cast %55 : vector<1x4x648xf32> to vector<4x648xf32>
    %57 = arith.truncf %56 : vector<4x648xf32> to vector<4x648xbf16>
    %c8 = arith.constant 8 : index
    %c0_41 = arith.constant 0 : index
    %c0_42 = arith.constant 0 : index
    %58 = vector.load %arg3[%c8, %c0_41, %c0_42] : memref<9x4x4xbf16, #tpu.memory_space<vmem>>, vector<1x4x4xbf16>
    %59 = vector.shape_cast %58 : vector<1x4x4xbf16> to vector<4x4xbf16>
    %cst_43 = arith.constant dense<0.000000e+00> : vector<4x648xf32>
    %60 = tpu.matmul %59, %57, %cst_43 {dimension_numbers = #tpu.dot_dimension_numbers<[1], [0], [0], [1], [0, 0, 1, 1], [], []>} : vector<4x4xbf16>, vector<4x648xbf16>, vector<4x648xf32> -> vector<4x648xf32>
    %61 = arith.addf %54, %60 : vector<4x648xf32>
    %c0_44 = arith.constant 0 : index
    %c0_45 = arith.constant 0 : index
    %62 = vector.load %arg4[%c0_44, %c0_45] : memref<4x1xf32, #tpu.memory_space<vmem>>, vector<4x1xf32>
    %63 = vector.broadcast %62 : vector<4x1xf32> to vector<4x648xf32>
    %64 = arith.addf %61, %63 : vector<4x648xf32>
    %cst_46 = arith.constant 0.000000e+00 : f32
    %65 = vector.broadcast %cst_46 : f32 to vector<4x648xf32>
    %66 = arith.maximumf %64, %65 : vector<4x648xf32>
    %c0_47 = arith.constant 0 : index
    %c0_48 = arith.constant 0 : index
    %67 = vector.load %arg1[%c0_47, %c0_48] : memref<1x648xf32, #tpu.memory_space<vmem>>, vector<1x648xf32>
    %68 = vector.broadcast %67 : vector<1x648xf32> to vector<4x648xf32>
    %69 = arith.mulf %66, %68 : vector<4x648xf32>
    %cst_49 = arith.constant 0.000000e+00 : bf16
    %70 = vector.broadcast %cst_49 : bf16 to vector<4x128xbf16>
    %c0_50 = arith.constant 0 : index
    %c0_51 = arith.constant 0 : index
    %71 = vector.load %arg8[%c0_50, %c0_51] : memref<4x896xbf16, #tpu.memory_space<vmem>>, vector<4x128xbf16>
    tpu.vector_store %arg8[%c0_50, %c0_51], %70 {strides = array<i32>} : memref<4x896xbf16, #tpu.memory_space<vmem>>, vector<4x128xbf16>,
    %cst_52 = arith.constant 0.000000e+00 : bf16
    %72 = vector.broadcast %cst_52 : bf16 to vector<4x120xbf16>
    %c0_53 = arith.constant 0 : index
    %c776 = arith.constant 776 : index
    %73 = vector.load %arg8[%c0_53, %c776] : memref<4x896xbf16, #tpu.memory_space<vmem>>, vector<4x120xbf16>
    tpu.vector_store %arg8[%c0_53, %c776], %72 {strides = array<i32>} : memref<4x896xbf16, #tpu.memory_space<vmem>>, vector<4x120xbf16>,
    %74 = arith.truncf %69 : vector<4x648xf32> to vector<4x648xbf16>
    %c0_54 = arith.constant 0 : index
    %c128_55 = arith.constant 128 : index
    %75 = vector.load %arg8[%c0_54, %c128_55] : memref<4x896xbf16, #tpu.memory_space<vmem>>, vector<4x648xbf16>
    tpu.vector_store %arg8[%c0_54, %c128_55], %74 {strides = array<i32>} : memref<4x896xbf16, #tpu.memory_space<vmem>>, vector<4x648xbf16>,
    %c0_56 = arith.constant 0 : index
    %c0_57 = arith.constant 0 : index
    %c0_58 = arith.constant 0 : index
    %76 = vector.load %arg5[%c0_56, %c0_57, %c0_58] : memref<9x4x4xbf16, #tpu.memory_space<vmem>>, vector<1x4x4xbf16>
    %77 = vector.shape_cast %76 : vector<1x4x4xbf16> to vector<4x4xbf16>
    %c0_59 = arith.constant 0 : index
    %c109_60 = arith.constant 109 : index
    %78 = vector.load %arg8[%c0_59, %c109_60] : memref<4x896xbf16, #tpu.memory_space<vmem>>, vector<4x648xbf16>
    %cst_61 = arith.constant dense<0.000000e+00> : vector<4x648xf32>
    %79 = tpu.matmul %77, %78, %cst_61 {dimension_numbers = #tpu.dot_dimension_numbers<[1], [0], [0], [1], [0, 0, 1, 1], [], []>} : vector<4x4xbf16>, vector<4x648xbf16>, vector<4x648xf32> -> vector<4x648xf32>
    %c1_62 = arith.constant 1 : index
    %c0_63 = arith.constant 0 : index
    %c0_64 = arith.constant 0 : index
    %80 = vector.load %arg5[%c1_62, %c0_63, %c0_64] : memref<9x4x4xbf16, #tpu.memory_space<vmem>>, vector<1x4x4xbf16>
    %81 = vector.shape_cast %80 : vector<1x4x4xbf16> to vector<4x4xbf16>
    %c0_65 = arith.constant 0 : index
    %c110_66 = arith.constant 110 : index
    %82 = vector.load %arg8[%c0_65, %c110_66] : memref<4x896xbf16, #tpu.memory_space<vmem>>, vector<4x648xbf16>
    %cst_67 = arith.constant dense<0.000000e+00> : vector<4x648xf32>
    %83 = tpu.matmul %81, %82, %cst_67 {dimension_numbers = #tpu.dot_dimension_numbers<[1], [0], [0], [1], [0, 0, 1, 1], [], []>} : vector<4x4xbf16>, vector<4x648xbf16>, vector<4x648xf32> -> vector<4x648xf32>
    %84 = arith.addf %79, %83 : vector<4x648xf32>
    %c2_68 = arith.constant 2 : index
    %c0_69 = arith.constant 0 : index
    %c0_70 = arith.constant 0 : index
    %85 = vector.load %arg5[%c2_68, %c0_69, %c0_70] : memref<9x4x4xbf16, #tpu.memory_space<vmem>>, vector<1x4x4xbf16>
    %86 = vector.shape_cast %85 : vector<1x4x4xbf16> to vector<4x4xbf16>
    %c0_71 = arith.constant 0 : index
    %c111_72 = arith.constant 111 : index
    %87 = vector.load %arg8[%c0_71, %c111_72] : memref<4x896xbf16, #tpu.memory_space<vmem>>, vector<4x648xbf16>
    %cst_73 = arith.constant dense<0.000000e+00> : vector<4x648xf32>
    %88 = tpu.matmul %86, %87, %cst_73 {dimension_numbers = #tpu.dot_dimension_numbers<[1], [0], [0], [1], [0, 0, 1, 1], [], []>} : vector<4x4xbf16>, vector<4x648xbf16>, vector<4x648xf32> -> vector<4x648xf32>
    %89 = arith.addf %84, %88 : vector<4x648xf32>
    %c3_74 = arith.constant 3 : index
    %c0_75 = arith.constant 0 : index
    %c0_76 = arith.constant 0 : index
    %90 = vector.load %arg5[%c3_74, %c0_75, %c0_76] : memref<9x4x4xbf16, #tpu.memory_space<vmem>>, vector<1x4x4xbf16>
    %91 = vector.shape_cast %90 : vector<1x4x4xbf16> to vector<4x4xbf16>
    %c0_77 = arith.constant 0 : index
    %c127_78 = arith.constant 127 : index
    %92 = vector.load %arg8[%c0_77, %c127_78] : memref<4x896xbf16, #tpu.memory_space<vmem>>, vector<4x648xbf16>
    %cst_79 = arith.constant dense<0.000000e+00> : vector<4x648xf32>
    %93 = tpu.matmul %91, %92, %cst_79 {dimension_numbers = #tpu.dot_dimension_numbers<[1], [0], [0], [1], [0, 0, 1, 1], [], []>} : vector<4x4xbf16>, vector<4x648xbf16>, vector<4x648xf32> -> vector<4x648xf32>
    %94 = arith.addf %89, %93 : vector<4x648xf32>
    %c4_80 = arith.constant 4 : index
    %c0_81 = arith.constant 0 : index
    %c0_82 = arith.constant 0 : index
    %95 = vector.load %arg5[%c4_80, %c0_81, %c0_82] : memref<9x4x4xbf16, #tpu.memory_space<vmem>>, vector<1x4x4xbf16>
    %96 = vector.shape_cast %95 : vector<1x4x4xbf16> to vector<4x4xbf16>
    %c0_83 = arith.constant 0 : index
    %c128_84 = arith.constant 128 : index
    %97 = vector.load %arg8[%c0_83, %c128_84] : memref<4x896xbf16, #tpu.memory_space<vmem>>, vector<4x648xbf16>
    %cst_85 = arith.constant dense<0.000000e+00> : vector<4x648xf32>
    %98 = tpu.matmul %96, %97, %cst_85 {dimension_numbers = #tpu.dot_dimension_numbers<[1], [0], [0], [1], [0, 0, 1, 1], [], []>} : vector<4x4xbf16>, vector<4x648xbf16>, vector<4x648xf32> -> vector<4x648xf32>
    %99 = arith.addf %94, %98 : vector<4x648xf32>
    %c5_86 = arith.constant 5 : index
    %c0_87 = arith.constant 0 : index
    %c0_88 = arith.constant 0 : index
    %100 = vector.load %arg5[%c5_86, %c0_87, %c0_88] : memref<9x4x4xbf16, #tpu.memory_space<vmem>>, vector<1x4x4xbf16>
    %101 = vector.shape_cast %100 : vector<1x4x4xbf16> to vector<4x4xbf16>
    %c0_89 = arith.constant 0 : index
    %c129_90 = arith.constant 129 : index
    %102 = vector.load %arg8[%c0_89, %c129_90] : memref<4x896xbf16, #tpu.memory_space<vmem>>, vector<4x648xbf16>
    %cst_91 = arith.constant dense<0.000000e+00> : vector<4x648xf32>
    %103 = tpu.matmul %101, %102, %cst_91 {dimension_numbers = #tpu.dot_dimension_numbers<[1], [0], [0], [1], [0, 0, 1, 1], [], []>} : vector<4x4xbf16>, vector<4x648xbf16>, vector<4x648xf32> -> vector<4x648xf32>
    %104 = arith.addf %99, %103 : vector<4x648xf32>
    %c6_92 = arith.constant 6 : index
    %c0_93 = arith.constant 0 : index
    %c0_94 = arith.constant 0 : index
    %105 = vector.load %arg5[%c6_92, %c0_93, %c0_94] : memref<9x4x4xbf16, #tpu.memory_space<vmem>>, vector<1x4x4xbf16>
    %106 = vector.shape_cast %105 : vector<1x4x4xbf16> to vector<4x4xbf16>
    %c0_95 = arith.constant 0 : index
    %c145_96 = arith.constant 145 : index
    %107 = vector.load %arg8[%c0_95, %c145_96] : memref<4x896xbf16, #tpu.memory_space<vmem>>, vector<4x648xbf16>
    %cst_97 = arith.constant dense<0.000000e+00> : vector<4x648xf32>
    %108 = tpu.matmul %106, %107, %cst_97 {dimension_numbers = #tpu.dot_dimension_numbers<[1], [0], [0], [1], [0, 0, 1, 1], [], []>} : vector<4x4xbf16>, vector<4x648xbf16>, vector<4x648xf32> -> vector<4x648xf32>
    %109 = arith.addf %104, %108 : vector<4x648xf32>
    %c7_98 = arith.constant 7 : index
    %c0_99 = arith.constant 0 : index
    %c0_100 = arith.constant 0 : index
    %110 = vector.load %arg5[%c7_98, %c0_99, %c0_100] : memref<9x4x4xbf16, #tpu.memory_space<vmem>>, vector<1x4x4xbf16>
    %111 = vector.shape_cast %110 : vector<1x4x4xbf16> to vector<4x4xbf16>
    %c0_101 = arith.constant 0 : index
    %c146_102 = arith.constant 146 : index
    %112 = vector.load %arg8[%c0_101, %c146_102] : memref<4x896xbf16, #tpu.memory_space<vmem>>, vector<4x648xbf16>
    %cst_103 = arith.constant dense<0.000000e+00> : vector<4x648xf32>
    %113 = tpu.matmul %111, %112, %cst_103 {dimension_numbers = #tpu.dot_dimension_numbers<[1], [0], [0], [1], [0, 0, 1, 1], [], []>} : vector<4x4xbf16>, vector<4x648xbf16>, vector<4x648xf32> -> vector<4x648xf32>
    %114 = arith.addf %109, %113 : vector<4x648xf32>
    %c8_104 = arith.constant 8 : index
    %c0_105 = arith.constant 0 : index
    %c0_106 = arith.constant 0 : index
    %115 = vector.load %arg5[%c8_104, %c0_105, %c0_106] : memref<9x4x4xbf16, #tpu.memory_space<vmem>>, vector<1x4x4xbf16>
    %116 = vector.shape_cast %115 : vector<1x4x4xbf16> to vector<4x4xbf16>
    %c0_107 = arith.constant 0 : index
    %c147_108 = arith.constant 147 : index
    %117 = vector.load %arg8[%c0_107, %c147_108] : memref<4x896xbf16, #tpu.memory_space<vmem>>, vector<4x648xbf16>
    %cst_109 = arith.constant dense<0.000000e+00> : vector<4x648xf32>
    %118 = tpu.matmul %116, %117, %cst_109 {dimension_numbers = #tpu.dot_dimension_numbers<[1], [0], [0], [1], [0, 0, 1, 1], [], []>} : vector<4x4xbf16>, vector<4x648xbf16>, vector<4x648xf32> -> vector<4x648xf32>
    %119 = arith.addf %114, %118 : vector<4x648xf32>
    %c0_110 = arith.constant 0 : index
    %c0_111 = arith.constant 0 : index
    %120 = vector.load %arg6[%c0_110, %c0_111] : memref<4x1xf32, #tpu.memory_space<vmem>>, vector<4x1xf32>
    %121 = vector.broadcast %120 : vector<4x1xf32> to vector<4x648xf32>
    %122 = arith.addf %119, %121 : vector<4x648xf32>
    %c0_112 = arith.constant 0 : index
    %c0_113 = arith.constant 0 : index
    %c128_114 = arith.constant 128 : index
    %123 = vector.load %arg2[%c0_112, %c0_113, %c128_114] : memref<1x4x896xf32, #tpu.memory_space<vmem>>, vector<1x4x648xf32>
    %124 = vector.shape_cast %123 : vector<1x4x648xf32> to vector<4x648xf32>
    %125 = arith.addf %122, %124 : vector<4x648xf32>
    %cst_115 = arith.constant 0.000000e+00 : f32
    %126 = vector.broadcast %cst_115 : f32 to vector<4x648xf32>
    %127 = arith.maximumf %125, %126 : vector<4x648xf32>
    %c0_116 = arith.constant 0 : index
    %c0_117 = arith.constant 0 : index
    %c0_118 = arith.constant 0 : index
    %128 = vector.load %arg7[%c0_116, %c0_117, %c0_118] : memref<1x4x648xf32, #tpu.memory_space<vmem>>, vector<1x4x648xf32>
    %129 = vector.shape_cast %128 : vector<1x4x648xf32> to vector<4x648xf32>
    %130 = vector.shape_cast %127 : vector<4x648xf32> to vector<1x4x648xf32>
    tpu.vector_store %arg7[%c0_116, %c0_117, %c0_118], %130 {strides = array<i32>} : memref<1x4x648xf32, #tpu.memory_space<vmem>>, vector<1x4x648xf32>,
    return
  }
  func.func @transform_0(%arg0: i32) -> (i32, i32) {
    %c0_i32 = arith.constant 0 : i32
    %c0_i32_0 = arith.constant 0 : i32
    %c0_i32_1 = arith.constant 0 : i32
    return %c0_i32, %c0_i32_0 : i32, i32
  }
  func.func @transform_1(%arg0: i32) -> (i32, i32, i32) {
    %c0_i32 = arith.constant 0 : i32
    %c0_i32_0 = arith.constant 0 : i32
    %c0_i32_1 = arith.constant 0 : i32
    return %arg0, %c0_i32, %c0_i32_0 : i32, i32, i32
  }
  func.func @transform_2(%arg0: i32) -> (i32, i32, i32) {
    %c0_i32 = arith.constant 0 : i32
    %c0_i32_0 = arith.constant 0 : i32
    %c0_i32_1 = arith.constant 0 : i32
    %c0_i32_2 = arith.constant 0 : i32
    return %c0_i32, %c0_i32_0, %c0_i32_1 : i32, i32, i32
  }
  func.func @transform_3(%arg0: i32) -> (i32, i32) {
    %c0_i32 = arith.constant 0 : i32
    %c0_i32_0 = arith.constant 0 : i32
    %c0_i32_1 = arith.constant 0 : i32
    return %c0_i32, %c0_i32_0 : i32, i32
  }
  func.func @transform_4(%arg0: i32) -> (i32, i32, i32) {
    %c0_i32 = arith.constant 0 : i32
    %c0_i32_0 = arith.constant 0 : i32
    %c0_i32_1 = arith.constant 0 : i32
    %c0_i32_2 = arith.constant 0 : i32
    return %c0_i32, %c0_i32_0, %c0_i32_1 : i32, i32, i32
  }
  func.func @transform_5(%arg0: i32) -> (i32, i32) {
    %c0_i32 = arith.constant 0 : i32
    %c0_i32_0 = arith.constant 0 : i32
    %c0_i32_1 = arith.constant 0 : i32
    return %c0_i32, %c0_i32_0 : i32, i32
  }
  func.func @transform_6(%arg0: i32) -> (i32, i32, i32) {
    %c0_i32 = arith.constant 0 : i32
    %c0_i32_0 = arith.constant 0 : i32
    %c0_i32_1 = arith.constant 0 : i32
    return %arg0, %c0_i32, %c0_i32_0 : i32, i32, i32
  }
}

</mosaic_0001>

<llo_original>
// kernel: tpu_custom_call.1
$region0: #{tpu_custom_call.1}
  #allocation0 [shape = 'u32[]', space=smem, size = 0x4, offset = 0x4, fixed_abs, tag = 'smem constant byte address 0x4 - core index']
  #allocation1 [shape = 'u32[72,128]{1,0:T(1,128)}', space=vmem, size = 0x9000, scoped, tag = 'internal scratch']
  #allocation2 [shape = 'bf16[4,896]{1,0:T(4,128)(2,1)}', space=vmem, size = 0x1c00, scoped, tag = 'scratch operand']
  %s0 = inlined_call_operand.vmem [shape: f32[1,648], index: 0, kind: input, shape index: {}]
  %s1 = inlined_call_operand.vmem [shape: f32[1,4,896], index: 1, kind: input, shape index: {}]
  %s2 = inlined_call_operand.vmem [shape: bf16[9,4,4], index: 2, kind: input, shape index: {}]
  %s3 = inlined_call_operand.vmem [shape: f32[4,1], index: 3, kind: input, shape index: {}]
  %s4 = inlined_call_operand.vmem [shape: bf16[9,4,4], index: 4, kind: input, shape index: {}]
  %s5 = inlined_call_operand.vmem [shape: f32[4,1], index: 5, kind: input, shape index: {}]
  %s6 = inlined_call_operand.hbm [shape: f32[1,4,648], index: 6, kind: output, shape index: {}]
  %s7 = sld [smem:[#allocation0]]
  $region34: #{tpu_custom_call.1} parent=0
    _
  %s9 = ssub.s32 1, %s7
  %s10 = scalar_select 0, %s9, %s7
  $region1: #{tpu_custom_call.1} parent=0
    #allocation3 [shape = 'u8[12288]{0}', space=vmem, size = 0x3000, scoped, tag = 'output window, operand 0, single buffered']
    #allocation4 [shape = 's32[1]{0}', space=sflag, size = 0x4, scoped, tag = 'scoped memory for tpu_custom_call.1']
    %11 = vsyncpa [#allocation4], 0
    // Predicated region
    $region2: #{tpu_custom_call.1} parent=1 // pred_check
      _
    $region3: #{tpu_custom_call.1} parent=1 // pred_check_branch
      %13 = sbr.rel (0) target = $region5
    $region4: #{tpu_custom_call.1} parent=1 // pred_region
      _
    $region5: #{tpu_custom_call.1} parent=1 // pred_fallthru
      _
    // Predicated region
    $region6: #{tpu_custom_call.1} parent=1 // pred_check
      _
    $region7: #{tpu_custom_call.1} parent=1 // pred_check_branch
      %15 = sbr.rel (0) target = $region9
    $region8: #{tpu_custom_call.1} parent=1 // pred_region
      _
    $region9: #{tpu_custom_call.1} parent=1 // pred_fallthru
      _
    // Predicated region
    $region10: #{tpu_custom_call.1} parent=1 // pred_check
      _
    $region11: #{tpu_custom_call.1} parent=1 // pred_check_branch
      %17 = sbr.rel (0) target = $region13
    $region12: #{tpu_custom_call.1} parent=1 // pred_region
      _
    $region13: #{tpu_custom_call.1} parent=1 // pred_fallthru
      _
    // Predicated region
    $region14: #{tpu_custom_call.1} parent=1 // pred_check
      _
    $region15: #{tpu_custom_call.1} parent=1 // pred_check_branch
      %19 = sbr.rel (0) target = $region17
    $region16: #{tpu_custom_call.1} parent=1 // pred_region
      _
    $region17: #{tpu_custom_call.1} parent=1 // pred_fallthru
      _
    // Predicated region
    $region18: #{tpu_custom_call.1} parent=1 // pred_check
      _
    $region19: #{tpu_custom_call.1} parent=1 // pred_check_branch
      %21 = sbr.rel (0) target = $region21
    $region20: #{tpu_custom_call.1} parent=1 // pred_region
      _
    $region21: #{tpu_custom_call.1} parent=1 // pred_fallthru
      _
    // Predicated region
    $region22: #{tpu_custom_call.1} parent=1 // pred_check
      _
    $region23: #{tpu_custom_call.1} parent=1 // pred_check_branch
      %23 = sbr.rel (0) target = $region25
    $region24: #{tpu_custom_call.1} parent=1 // pred_region
      _
    $region25: #{tpu_custom_call.1} parent=1 // pred_fallthru
      _
    %v25 = vld [vmem:[%s1] sm:$0xff]
    %v26 = vld [vmem:[%s1 + $0x8] sm:$0xff]
    %v27 = vld [vmem:[%s1 + $0x10] sm:$0xff]
    %31 = vst [vmem:[#allocation1] ss:$2 sm:$0xff] %v25
    %s32 = scalar_lea.vmem [#allocation1], 16
    %33 = vst [vmem:[%s32] ss:$2 sm:$0xff] %v26
    %s34 = scalar_lea.vmem [#allocation1], 32
    %35 = vst [vmem:[%s34] ss:$2 sm:$0xff] %v27
    %v36 = vld.sshfl [vmem:[#allocation1] sm:$0xff pattern:$0x75316420]
    %v37 = vld.sshfl [vmem:[#allocation1 + $0x8] sm:$0xff pattern:$0x75316420]
    %v38 = vld.sshfl [vmem:[#allocation1 + $0x10] sm:$0xff pattern:$0x75316420]
    %v39 = vld.sshfl [vmem:[#allocation1 + $0x18] sm:$0xff pattern:$0x75316420]
    %v40 = vld.sshfl [vmem:[#allocation1 + $0x20] sm:$0xff pattern:$0x75316420]
    %v41 = vld.sshfl [vmem:[#allocation1 + $0x28] sm:$0xff pattern:$0x75316420]
    %v48 = vpack.c.bf16 %v36, %v36
    %v49 = vpack.c.bf16 %v37, %v37
    %v50 = vpack.c.bf16 %v38, %v38
    %v51 = vpack.c.bf16 %v39, %v39
    %v52 = vpack.c.bf16 %v40, %v40
    %v53 = vpack.c.bf16 %v41, %v41
    %v54 = vld [vmem:[%s2] sm:$0x3]
    %v55 = vld [vmem:[%s1] sm:$0xff]
    %v56 = vld [vmem:[%s1 + $0x8] sm:$0xff]
    %v57 = vld [vmem:[%s1 + $0x10] sm:$0xff]
    %61 = vst [vmem:[#allocation1] ss:$2 sm:$0xff] %v55
    %s62 = scalar_lea.vmem [#allocation1], 16
    %63 = vst [vmem:[%s62] ss:$2 sm:$0xff] %v56
    %s64 = scalar_lea.vmem [#allocation1], 32
    %65 = vst [vmem:[%s64] ss:$2 sm:$0xff] %v57
    %v66 = vld.sshfl [vmem:[#allocation1] sm:$0xff pattern:$0x75316420]
    %v67 = vld.sshfl [vmem:[#allocation1 + $0x8] sm:$0xff pattern:$0x75316420]
    %v68 = vld.sshfl [vmem:[#allocation1 + $0x10] sm:$0xff pattern:$0x75316420]
    %v69 = vld.sshfl [vmem:[#allocation1 + $0x18] sm:$0xff pattern:$0x75316420]
    %v70 = vld.sshfl [vmem:[#allocation1 + $0x20] sm:$0xff pattern:$0x75316420]
    %v71 = vld.sshfl [vmem:[#allocation1 + $0x28] sm:$0xff pattern:$0x75316420]
    %v78 = vpack.c.bf16 %v66, %v66
    %v79 = vpack.c.bf16 %v67, %v67
    %v80 = vpack.c.bf16 %v68, %v68
    %v81 = vpack.c.bf16 %v69, %v69
    %v82 = vpack.c.bf16 %v70, %v70
    %v83 = vpack.c.bf16 %v71, %v71
    %s84 = scalar_lea.vmem %s2, 2
    %v85 = vld [vmem:[%s84] sm:$0x3]
    %92 = vrot.lane.b32.xlu0 %v78, 18
    %v93 = vpop.permute.xlu0 %92
    %94 = vrot.lane.b32.xlu0 %v79, 18
    %v95 = vpop.permute.xlu0 %94
    %96 = vrot.lane.b32.xlu0 %v80, 18
    %v97 = vpop.permute.xlu0 %96
    %98 = vrot.lane.b32.xlu0 %v81, 18
    %v99 = vpop.permute.xlu0 %98
    %100 = vrot.lane.b32.xlu0 %v82, 18
    %v101 = vpop.permute.xlu0 %100
    %102 = vrot.lane.b32.xlu0 %v83, 18
    %v103 = vpop.permute.xlu0 %102
    %vm104 = vcmask 146432
    %v105 = vsel %vm104, %v93, %v95
    %v106 = vsel %vm104, %v95, %v97
    %v107 = vsel %vm104, %v97, %v99
    %v108 = vsel %vm104, %v99, %v101
    %v109 = vsel %vm104, %v101, %v103
    %vm110 = vcmask 31744
    %v112 = vsel %vm110, %v85, 0
    %vm114 = vcmask 1041408
    %v116 = vsel %vm114, %v105, 0
    %v119 = vsel %vm114, %v106, 0
    %v122 = vsel %vm114, %v107, 0
    %v125 = vsel %vm114, %v108, 0
    %v128 = vsel %vm114, %v109, 0
    %v131 = vsel %vm114, %v103, 0
    %133 = vmatpush.bf16.msra.mxu0 0
    %134 = vmatpush.bf16.msra.mxu0 0
    %135 = vmatpush.bf16.msra.mxu0 0
    %136 = vmatpush.bf16.msra.mxu0 0
    %137 = vmatpush.bf16.msra.mxu0 0
    %138 = vmatpush.bf16.msra.mxu0 0
    %139 = vmatpush.bf16.msra.mxu0 0
    %140 = vmatpush.bf16.msra.mxu0 %v116
    %141 = vmatmul.bf16.gmra.mxu0 %v112
    %v142 = vpop.f32.mrf.mxu0
    %v143 = vadd.f32 0.0, %v142
    %v144 = vpop.f32.mrf.mxu0
    %145 = vdwg.mxu0
    %146 = vmatpush.bf16.msra.mxu0 0
    %147 = vmatpush.bf16.msra.mxu0 0
    %148 = vmatpush.bf16.msra.mxu0 0
    %149 = vmatpush.bf16.msra.mxu0 0
    %150 = vmatpush.bf16.msra.mxu0 0
    %151 = vmatpush.bf16.msra.mxu0 0
    %152 = vmatpush.bf16.msra.mxu0 0
    %153 = vmatpush.bf16.msra.mxu0 %v119
    %154 = vmatmul.bf16.gmra.mxu0 %v112
    %v155 = vpop.f32.mrf.mxu0
    %v156 = vadd.f32 0.0, %v155
    %v157 = vpop.f32.mrf.mxu0
    %158 = vdwg.mxu0
    %159 = vmatpush.bf16.msra.mxu0 0
    %160 = vmatpush.bf16.msra.mxu0 0
    %161 = vmatpush.bf16.msra.mxu0 0
    %162 = vmatpush.bf16.msra.mxu0 0
    %163 = vmatpush.bf16.msra.mxu0 0
    %164 = vmatpush.bf16.msra.mxu0 0
    %165 = vmatpush.bf16.msra.mxu0 0
    %166 = vmatpush.bf16.msra.mxu0 %v122
    %167 = vmatmul.bf16.gmra.mxu0 %v112
    %v168 = vpop.f32.mrf.mxu0
    %v169 = vadd.f32 0.0, %v168
    %v170 = vpop.f32.mrf.mxu0
    %171 = vdwg.mxu0
    %172 = vmatpush.bf16.msra.mxu0 0
    %173 = vmatpush.bf16.msra.mxu0 0
    %174 = vmatpush.bf16.msra.mxu0 0
    %175 = vmatpush.bf16.msra.mxu0 0
    %176 = vmatpush.bf16.msra.mxu0 0
    %177 = vmatpush.bf16.msra.mxu0 0
    %178 = vmatpush.bf16.msra.mxu0 0
    %179 = vmatpush.bf16.msra.mxu0 %v125
    %180 = vmatmul.bf16.gmra.mxu0 %v112
    %v181 = vpop.f32.mrf.mxu0
    %v182 = vadd.f32 0.0, %v181
    %v183 = vpop.f32.mrf.mxu0
    %184 = vdwg.mxu0
    %185 = vmatpush.bf16.msra.mxu0 0
    %186 = vmatpush.bf16.msra.mxu0 0
    %187 = vmatpush.bf16.msra.mxu0 0
    %188 = vmatpush.bf16.msra.mxu0 0
    %189 = vmatpush.bf16.msra.mxu0 0
    %190 = vmatpush.bf16.msra.mxu0 0
    %191 = vmatpush.bf16.msra.mxu0 0
    %192 = vmatpush.bf16.msra.mxu0 %v128
    %193 = vmatmul.bf16.gmra.mxu0 %v112
    %v194 = vpop.f32.mrf.mxu0
    %v195 = vadd.f32 0.0, %v194
    %v196 = vpop.f32.mrf.mxu0
    %197 = vdwg.mxu0
    %198 = vmatpush.bf16.msra.mxu0 0
    %199 = vmatpush.bf16.msra.mxu0 0
    %200 = vmatpush.bf16.msra.mxu0 0
    %201 = vmatpush.bf16.msra.mxu0 0
    %202 = vmatpush.bf16.msra.mxu0 0
    %203 = vmatpush.bf16.msra.mxu0 0
    %204 = vmatpush.bf16.msra.mxu0 0
    %205 = vmatpush.bf16.msra.mxu0 %v131
    %206 = vmatmul.bf16.gmra.mxu0 %v112
    %v207 = vpop.f32.mrf.mxu0
    %v208 = vadd.f32 0.0, %v207
    %v209 = vpop.f32.mrf.mxu0
    %210 = vdwg.mxu0
    %217 = vrot.lane.b32.xlu0 %v48, 19
    %v218 = vpop.permute.xlu0 %217
    %219 = vrot.lane.b32.xlu0 %v49, 19
    %v220 = vpop.permute.xlu0 %219
    %221 = vrot.lane.b32.xlu0 %v50, 19
    %v222 = vpop.permute.xlu0 %221
    %223 = vrot.lane.b32.xlu0 %v51, 19
    %v224 = vpop.permute.xlu0 %223
    %225 = vrot.lane.b32.xlu0 %v52, 19
    %v226 = vpop.permute.xlu0 %225
    %227 = vrot.lane.b32.xlu0 %v53, 19
    %v228 = vpop.permute.xlu0 %227
    %vm229 = vcmask 154624
    %v230 = vsel %vm229, %v218, %v220
    %v231 = vsel %vm229, %v220, %v222
    %v232 = vsel %vm229, %v222, %v224
    %v233 = vsel %vm229, %v224, %v226
    %v234 = vsel %vm229, %v226, %v228
    %v236 = vsel %vm110, %v54, 0
    %v239 = vsel %vm114, %v230, 0
    %v242 = vsel %vm114, %v231, 0
    %v245 = vsel %vm114, %v232, 0
    %v248 = vsel %vm114, %v233, 0
    %v251 = vsel %vm114, %v234, 0
    %v254 = vsel %vm114, %v228, 0
    %256 = vmatpush.bf16.msra.mxu0 0
    %257 = vmatpush.bf16.msra.mxu0 0
    %258 = vmatpush.bf16.msra.mxu0 0
    %259 = vmatpush.bf16.msra.mxu0 0
    %260 = vmatpush.bf16.msra.mxu0 0
    %261 = vmatpush.bf16.msra.mxu0 0
    %262 = vmatpush.bf16.msra.mxu0 0
    %263 = vmatpush.bf16.msra.mxu0 %v239
    %264 = vmatmul.bf16.gmra.mxu0 %v236
    %v265 = vpop.f32.mrf.mxu0
    %v266 = vadd.f32 %v143, %v265
    %v267 = vpop.f32.mrf.mxu0
    %268 = vdwg.mxu0
    %269 = vmatpush.bf16.msra.mxu0 0
    %270 = vmatpush.bf16.msra.mxu0 0
    %271 = vmatpush.bf16.msra.mxu0 0
    %272 = vmatpush.bf16.msra.mxu0 0
    %273 = vmatpush.bf16.msra.mxu0 0
    %274 = vmatpush.bf16.msra.mxu0 0
    %275 = vmatpush.bf16.msra.mxu0 0
    %276 = vmatpush.bf16.msra.mxu0 %v242
    %277 = vmatmul.bf16.gmra.mxu0 %v236
    %v278 = vpop.f32.mrf.mxu0
    %v279 = vadd.f32 %v156, %v278
    %v280 = vpop.f32.mrf.mxu0
    %281 = vdwg.mxu0
    %282 = vmatpush.bf16.msra.mxu0 0
    %283 = vmatpush.bf16.msra.mxu0 0
    %284 = vmatpush.bf16.msra.mxu0 0
    %285 = vmatpush.bf16.msra.mxu0 0
    %286 = vmatpush.bf16.msra.mxu0 0
    %287 = vmatpush.bf16.msra.mxu0 0
    %288 = vmatpush.bf16.msra.mxu0 0
    %289 = vmatpush.bf16.msra.mxu0 %v245
    %290 = vmatmul.bf16.gmra.mxu0 %v236
    %v291 = vpop.f32.mrf.mxu0
    %v292 = vadd.f32 %v169, %v291
    %v293 = vpop.f32.mrf.mxu0
    %294 = vdwg.mxu0
    %295 = vmatpush.bf16.msra.mxu0 0
    %296 = vmatpush.bf16.msra.mxu0 0
    %297 = vmatpush.bf16.msra.mxu0 0
    %298 = vmatpush.bf16.msra.mxu0 0
    %299 = vmatpush.bf16.msra.mxu0 0
    %300 = vmatpush.bf16.msra.mxu0 0
    %301 = vmatpush.bf16.msra.mxu0 0
    %302 = vmatpush.bf16.msra.mxu0 %v248
    %303 = vmatmul.bf16.gmra.mxu0 %v236
    %v304 = vpop.f32.mrf.mxu0
    %v305 = vadd.f32 %v182, %v304
    %v306 = vpop.f32.mrf.mxu0
    %307 = vdwg.mxu0
    %308 = vmatpush.bf16.msra.mxu0 0
    %309 = vmatpush.bf16.msra.mxu0 0
    %310 = vmatpush.bf16.msra.mxu0 0
    %311 = vmatpush.bf16.msra.mxu0 0
    %312 = vmatpush.bf16.msra.mxu0 0
    %313 = vmatpush.bf16.msra.mxu0 0
    %314 = vmatpush.bf16.msra.mxu0 0
    %315 = vmatpush.bf16.msra.mxu0 %v251
    %316 = vmatmul.bf16.gmra.mxu0 %v236
    %v317 = vpop.f32.mrf.mxu0
    %v318 = vadd.f32 %v195, %v317
    %v319 = vpop.f32.mrf.mxu0
    %320 = vdwg.mxu0
    %321 = vmatpush.bf16.msra.mxu0 0
    %322 = vmatpush.bf16.msra.mxu0 0
    %323 = vmatpush.bf16.msra.mxu0 0
    %324 = vmatpush.bf16.msra.mxu0 0
    %325 = vmatpush.bf16.msra.mxu0 0
    %326 = vmatpush.bf16.msra.mxu0 0
    %327 = vmatpush.bf16.msra.mxu0 0
    %328 = vmatpush.bf16.msra.mxu0 %v254
    %329 = vmatmul.bf16.gmra.mxu0 %v236
    %v330 = vpop.f32.mrf.mxu0
    %v331 = vadd.f32 %v208, %v330
    %v332 = vpop.f32.mrf.mxu0
    %333 = vdwg.mxu0
    %v334 = vld [vmem:[%s1] sm:$0xff]
    %v335 = vld [vmem:[%s1 + $0x8] sm:$0xff]
    %v336 = vld [vmem:[%s1 + $0x10] sm:$0xff]
    %340 = vst [vmem:[#allocation1] ss:$2 sm:$0xff] %v334
    %s341 = scalar_lea.vmem [#allocation1], 16
    %342 = vst [vmem:[%s341] ss:$2 sm:$0xff] %v335
    %s343 = scalar_lea.vmem [#allocation1], 32
    %344 = vst [vmem:[%s343] ss:$2 sm:$0xff] %v336
    %v345 = vld.sshfl [vmem:[#allocation1] sm:$0xff pattern:$0x75316420]
    %v346 = vld.sshfl [vmem:[#allocation1 + $0x8] sm:$0xff pattern:$0x75316420]
    %v347 = vld.sshfl [vmem:[#allocation1 + $0x10] sm:$0xff pattern:$0x75316420]
    %v348 = vld.sshfl [vmem:[#allocation1 + $0x18] sm:$0xff pattern:$0x75316420]
    %v349 = vld.sshfl [vmem:[#allocation1 + $0x20] sm:$0xff pattern:$0x75316420]
    %v350 = vld.sshfl [vmem:[#allocation1 + $0x28] sm:$0xff pattern:$0x75316420]
    %v357 = vpack.c.bf16 %v345, %v345
    %v358 = vpack.c.bf16 %v346, %v346
    %v359 = vpack.c.bf16 %v347, %v347
    %v360 = vpack.c.bf16 %v348, %v348
    %v361 = vpack.c.bf16 %v349, %v349
    %v362 = vpack.c.bf16 %v350, %v350
    %s363 = scalar_lea.vmem %s2, 4
    %v364 = vld [vmem:[%s363] sm:$0x3]
    %371 = vrot.lane.b32.xlu0 %v357, 17
    %v372 = vpop.permute.xlu0 %371
    %373 = vrot.lane.b32.xlu0 %v358, 17
    %v374 = vpop.permute.xlu0 %373
    %375 = vrot.lane.b32.xlu0 %v359, 17
    %v376 = vpop.permute.xlu0 %375
    %377 = vrot.lane.b32.xlu0 %v360, 17
    %v378 = vpop.permute.xlu0 %377
    %379 = vrot.lane.b32.xlu0 %v361, 17
    %v380 = vpop.permute.xlu0 %379
    %381 = vrot.lane.b32.xlu0 %v362, 17
    %v382 = vpop.permute.xlu0 %381
    %vm383 = vcmask 138240
    %v384 = vsel %vm383, %v372, %v374
    %v385 = vsel %vm383, %v374, %v376
    %v386 = vsel %vm383, %v376, %v378
    %v387 = vsel %vm383, %v378, %v380
    %v388 = vsel %vm383, %v380, %v382
    %v390 = vsel %vm110, %v364, 0
    %v393 = vsel %vm114, %v384, 0
    %v396 = vsel %vm114, %v385, 0
    %v399 = vsel %vm114, %v386, 0
    %v402 = vsel %vm114, %v387, 0
    %v405 = vsel %vm114, %v388, 0
    %v408 = vsel %vm114, %v382, 0
    %410 = vmatpush.bf16.msra.mxu0 0
    %411 = vmatpush.bf16.msra.mxu0 0
    %412 = vmatpush.bf16.msra.mxu0 0
    %413 = vmatpush.bf16.msra.mxu0 0
    %414 = vmatpush.bf16.msra.mxu0 0
    %415 = vmatpush.bf16.msra.mxu0 0
    %416 = vmatpush.bf16.msra.mxu0 0
    %417 = vmatpush.bf16.msra.mxu0 %v393
    %418 = vmatmul.bf16.gmra.mxu0 %v390
    %v419 = vpop.f32.mrf.mxu0
    %v420 = vadd.f32 0.0, %v419
    %v421 = vpop.f32.mrf.mxu0
    %422 = vdwg.mxu0
    %423 = vmatpush.bf16.msra.mxu0 0
    %424 = vmatpush.bf16.msra.mxu0 0
    %425 = vmatpush.bf16.msra.mxu0 0
    %426 = vmatpush.bf16.msra.mxu0 0
    %427 = vmatpush.bf16.msra.mxu0 0
    %428 = vmatpush.bf16.msra.mxu0 0
    %429 = vmatpush.bf16.msra.mxu0 0
    %430 = vmatpush.bf16.msra.mxu0 %v396
    %431 = vmatmul.bf16.gmra.mxu0 %v390
    %v432 = vpop.f32.mrf.mxu0
    %v433 = vadd.f32 0.0, %v432
    %v434 = vpop.f32.mrf.mxu0
    %435 = vdwg.mxu0
    %436 = vmatpush.bf16.msra.mxu0 0
    %437 = vmatpush.bf16.msra.mxu0 0
    %438 = vmatpush.bf16.msra.mxu0 0
    %439 = vmatpush.bf16.msra.mxu0 0
    %440 = vmatpush.bf16.msra.mxu0 0
    %441 = vmatpush.bf16.msra.mxu0 0
    %442 = vmatpush.bf16.msra.mxu0 0
    %443 = vmatpush.bf16.msra.mxu0 %v399
    %444 = vmatmul.bf16.gmra.mxu0 %v390
    %v445 = vpop.f32.mrf.mxu0
    %v446 = vadd.f32 0.0, %v445
    %v447 = vpop.f32.mrf.mxu0
    %448 = vdwg.mxu0
    %449 = vmatpush.bf16.msra.mxu0 0
    %450 = vmatpush.bf16.msra.mxu0 0
    %451 = vmatpush.bf16.msra.mxu0 0
    %452 = vmatpush.bf16.msra.mxu0 0
    %453 = vmatpush.bf16.msra.mxu0 0
    %454 = vmatpush.bf16.msra.mxu0 0
    %455 = vmatpush.bf16.msra.mxu0 0
    %456 = vmatpush.bf16.msra.mxu0 %v402
    %457 = vmatmul.bf16.gmra.mxu0 %v390
    %v458 = vpop.f32.mrf.mxu0
    %v459 = vadd.f32 0.0, %v458
    %v460 = vpop.f32.mrf.mxu0
    %461 = vdwg.mxu0
    %462 = vmatpush.bf16.msra.mxu0 0
    %463 = vmatpush.bf16.msra.mxu0 0
    %464 = vmatpush.bf16.msra.mxu0 0
    %465 = vmatpush.bf16.msra.mxu0 0
    %466 = vmatpush.bf16.msra.mxu0 0
    %467 = vmatpush.bf16.msra.mxu0 0
    %468 = vmatpush.bf16.msra.mxu0 0
    %469 = vmatpush.bf16.msra.mxu0 %v405
    %470 = vmatmul.bf16.gmra.mxu0 %v390
    %v471 = vpop.f32.mrf.mxu0
    %v472 = vadd.f32 0.0, %v471
    %v473 = vpop.f32.mrf.mxu0
    %474 = vdwg.mxu0
    %475 = vmatpush.bf16.msra.mxu0 0
    %476 = vmatpush.bf16.msra.mxu0 0
    %477 = vmatpush.bf16.msra.mxu0 0
    %478 = vmatpush.bf16.msra.mxu0 0
    %479 = vmatpush.bf16.msra.mxu0 0
    %480 = vmatpush.bf16.msra.mxu0 0
    %481 = vmatpush.bf16.msra.mxu0 0
    %482 = vmatpush.bf16.msra.mxu0 %v408
    %483 = vmatmul.bf16.gmra.mxu0 %v390
    %v484 = vpop.f32.mrf.mxu0
    %v485 = vadd.f32 0.0, %v484
    %v486 = vpop.f32.mrf.mxu0
    %487 = vdwg.mxu0
    %v488 = vadd.f32 %v266, %v420
    %v489 = vadd.f32 %v279, %v433
    %v490 = vadd.f32 %v292, %v446
    %v491 = vadd.f32 %v305, %v459
    %v492 = vadd.f32 %v318, %v472
    %v493 = vadd.f32 %v331, %v485
    %v494 = vld [vmem:[%s1] sm:$0xff]
    %v495 = vld [vmem:[%s1 + $0x8] sm:$0xff]
    %v496 = vld [vmem:[%s1 + $0x10] sm:$0xff]
    %v497 = vld [vmem:[%s1 + $0x18] sm:$0xf]
    %502 = vst [vmem:[#allocation1] ss:$2 sm:$0xff] %v494
    %s503 = scalar_lea.vmem [#allocation1], 16
    %504 = vst [vmem:[%s503] ss:$2 sm:$0xff] %v495
    %s505 = scalar_lea.vmem [#allocation1], 32
    %506 = vst [vmem:[%s505] ss:$2 sm:$0xff] %v496
    %s507 = scalar_lea.vmem [#allocation1], 48
    %508 = vst [vmem:[%s507] ss:$2 sm:$0xff] %v497
    %v509 = vld.sshfl [vmem:[#allocation1] sm:$0xff pattern:$0x75316420]
    %v510 = vld.sshfl [vmem:[#allocation1 + $0x8] sm:$0xff pattern:$0x75316420]
    %v511 = vld.sshfl [vmem:[#allocation1 + $0x10] sm:$0xff pattern:$0x75316420]
    %v512 = vld.sshfl [vmem:[#allocation1 + $0x18] sm:$0xff pattern:$0x75316420]
    %v513 = vld.sshfl [vmem:[#allocation1 + $0x20] sm:$0xff pattern:$0x75316420]
    %v514 = vld.sshfl [vmem:[#allocation1 + $0x28] sm:$0xff pattern:$0x75316420]
    %v515 = vld.sshfl [vmem:[#allocation1 + $0x30] sm:$0xff pattern:$0x75316420]
    %v523 = vpack.c.bf16 %v509, %v509
    %v524 = vpack.c.bf16 %v510, %v510
    %v525 = vpack.c.bf16 %v511, %v511
    %v526 = vpack.c.bf16 %v512, %v512
    %v527 = vpack.c.bf16 %v513, %v513
    %v528 = vpack.c.bf16 %v514, %v514
    %v529 = vpack.c.bf16 %v515, %v515
    %s530 = scalar_lea.vmem %s2, 6
    %v531 = vld [vmem:[%s530] sm:$0x3]
    %539 = vrot.lane.b32.xlu0 %v523, 1
    %v540 = vpop.permute.xlu0 %539
    %541 = vrot.lane.b32.xlu0 %v524, 1
    %v542 = vpop.permute.xlu0 %541
    %543 = vrot.lane.b32.xlu0 %v525, 1
    %v544 = vpop.permute.xlu0 %543
    %545 = vrot.lane.b32.xlu0 %v526, 1
    %v546 = vpop.permute.xlu0 %545
    %547 = vrot.lane.b32.xlu0 %v527, 1
    %v548 = vpop.permute.xlu0 %547
    %549 = vrot.lane.b32.xlu0 %v528, 1
    %v550 = vpop.permute.xlu0 %549
    %551 = vrot.lane.b32.xlu0 %v529, 1
    %v552 = vpop.permute.xlu0 %551
    %vm553 = vcmask 7168
    %v554 = vsel %vm553, %v540, %v542
    %v555 = vsel %vm553, %v542, %v544
    %v556 = vsel %vm553, %v544, %v546
    %v557 = vsel %vm553, %v546, %v548
    %v558 = vsel %vm553, %v548, %v550
    %v559 = vsel %vm553, %v550, %v552
    %v561 = vsel %vm110, %v531, 0
    %v564 = vsel %vm114, %v554, 0
    %v567 = vsel %vm114, %v555, 0
    %v570 = vsel %vm114, %v556, 0
    %v573 = vsel %vm114, %v557, 0
    %v576 = vsel %vm114, %v558, 0
    %v579 = vsel %vm114, %v559, 0
    %581 = vmatpush.bf16.msra.mxu0 0
    %582 = vmatpush.bf16.msra.mxu0 0
    %583 = vmatpush.bf16.msra.mxu0 0
    %584 = vmatpush.bf16.msra.mxu0 0
    %585 = vmatpush.bf16.msra.mxu0 0
    %586 = vmatpush.bf16.msra.mxu0 0
    %587 = vmatpush.bf16.msra.mxu0 0
    %588 = vmatpush.bf16.msra.mxu0 %v564
    %589 = vmatmul.bf16.gmra.mxu0 %v561
    %v590 = vpop.f32.mrf.mxu0
    %v591 = vadd.f32 0.0, %v590
    %v592 = vpop.f32.mrf.mxu0
    %593 = vdwg.mxu0
    %594 = vmatpush.bf16.msra.mxu0 0
    %595 = vmatpush.bf16.msra.mxu0 0
    %596 = vmatpush.bf16.msra.mxu0 0
    %597 = vmatpush.bf16.msra.mxu0 0
    %598 = vmatpush.bf16.msra.mxu0 0
    %599 = vmatpush.bf16.msra.mxu0 0
    %600 = vmatpush.bf16.msra.mxu0 0
    %601 = vmatpush.bf16.msra.mxu0 %v567
    %602 = vmatmul.bf16.gmra.mxu0 %v561
    %v603 = vpop.f32.mrf.mxu0
    %v604 = vadd.f32 0.0, %v603
    %v605 = vpop.f32.mrf.mxu0
    %606 = vdwg.mxu0
    %607 = vmatpush.bf16.msra.mxu0 0
    %608 = vmatpush.bf16.msra.mxu0 0
    %609 = vmatpush.bf16.msra.mxu0 0
    %610 = vmatpush.bf16.msra.mxu0 0
    %611 = vmatpush.bf16.msra.mxu0 0
    %612 = vmatpush.bf16.msra.mxu0 0
    %613 = vmatpush.bf16.msra.mxu0 0
    %614 = vmatpush.bf16.msra.mxu0 %v570
    %615 = vmatmul.bf16.gmra.mxu0 %v561
    %v616 = vpop.f32.mrf.mxu0
    %v617 = vadd.f32 0.0, %v616
    %v618 = vpop.f32.mrf.mxu0
    %619 = vdwg.mxu0
    %620 = vmatpush.bf16.msra.mxu0 0
    %621 = vmatpush.bf16.msra.mxu0 0
    %622 = vmatpush.bf16.msra.mxu0 0
    %623 = vmatpush.bf16.msra.mxu0 0
    %624 = vmatpush.bf16.msra.mxu0 0
    %625 = vmatpush.bf16.msra.mxu0 0
    %626 = vmatpush.bf16.msra.mxu0 0
    %627 = vmatpush.bf16.msra.mxu0 %v573
    %628 = vmatmul.bf16.gmra.mxu0 %v561
    %v629 = vpop.f32.mrf.mxu0
    %v630 = vadd.f32 0.0, %v629
    %v631 = vpop.f32.mrf.mxu0
    %632 = vdwg.mxu0
    %633 = vmatpush.bf16.msra.mxu0 0
    %634 = vmatpush.bf16.msra.mxu0 0
    %635 = vmatpush.bf16.msra.mxu0 0
    %636 = vmatpush.bf16.msra.mxu0 0
    %637 = vmatpush.bf16.msra.mxu0 0
    %638 = vmatpush.bf16.msra.mxu0 0
    %639 = vmatpush.bf16.msra.mxu0 0
    %640 = vmatpush.bf16.msra.mxu0 %v576
    %641 = vmatmul.bf16.gmra.mxu0 %v561
    %v642 = vpop.f32.mrf.mxu0
    %v643 = vadd.f32 0.0, %v642
    %v644 = vpop.f32.mrf.mxu0
    %645 = vdwg.mxu0
    %646 = vmatpush.bf16.msra.mxu0 0
    %647 = vmatpush.bf16.msra.mxu0 0
    %648 = vmatpush.bf16.msra.mxu0 0
    %649 = vmatpush.bf16.msra.mxu0 0
    %650 = vmatpush.bf16.msra.mxu0 0
    %651 = vmatpush.bf16.msra.mxu0 0
    %652 = vmatpush.bf16.msra.mxu0 0
    %653 = vmatpush.bf16.msra.mxu0 %v579
    %654 = vmatmul.bf16.gmra.mxu0 %v561
    %v655 = vpop.f32.mrf.mxu0
    %v656 = vadd.f32 0.0, %v655
    %v657 = vpop.f32.mrf.mxu0
    %658 = vdwg.mxu0
    %v659 = vadd.f32 %v488, %v591
    %v660 = vadd.f32 %v489, %v604
    %v661 = vadd.f32 %v490, %v617
    %v662 = vadd.f32 %v491, %v630
    %v663 = vadd.f32 %v492, %v643
    %v664 = vadd.f32 %v493, %v656
    %v665 = vld [vmem:[%s1 + $0x4] sm:$0xff]
    %v666 = vld [vmem:[%s1 + $0xc] sm:$0xff]
    %v667 = vld [vmem:[%s1 + $0x14] sm:$0xff]
    %671 = vst [vmem:[#allocation1] ss:$2 sm:$0xff] %v665
    %s672 = scalar_lea.vmem [#allocation1], 16
    %673 = vst [vmem:[%s672] ss:$2 sm:$0xff] %v666
    %s674 = scalar_lea.vmem [#allocation1], 32
    %675 = vst [vmem:[%s674] ss:$2 sm:$0xff] %v667
    %v676 = vld.sshfl [vmem:[#allocation1] sm:$0xff pattern:$0x75316420]
    %v677 = vld.sshfl [vmem:[#allocation1 + $0x8] sm:$0xff pattern:$0x75316420]
    %v678 = vld.sshfl [vmem:[#allocation1 + $0x10] sm:$0xff pattern:$0x75316420]
    %v679 = vld.sshfl [vmem:[#allocation1 + $0x18] sm:$0xff pattern:$0x75316420]
    %v680 = vld.sshfl [vmem:[#allocation1 + $0x20] sm:$0xff pattern:$0x75316420]
    %v681 = vld.sshfl [vmem:[#allocation1 + $0x28] sm:$0xff pattern:$0x75316420]
    %v688 = vpack.c.bf16 %v676, %v676
    %v689 = vpack.c.bf16 %v677, %v677
    %v690 = vpack.c.bf16 %v678, %v678
    %v691 = vpack.c.bf16 %v679, %v679
    %v692 = vpack.c.bf16 %v680, %v680
    %v693 = vpack.c.bf16 %v681, %v681
    %s694 = scalar_lea.vmem %s2, 8
    %v695 = vld [vmem:[%s694] sm:$0x3]
    %v697 = vsel %vm110, %v695, 0
    %v700 = vsel %vm114, %v688, 0
    %v703 = vsel %vm114, %v689, 0
    %v706 = vsel %vm114, %v690, 0
    %v709 = vsel %vm114, %v691, 0
    %v712 = vsel %vm114, %v692, 0
    %v715 = vsel %vm114, %v693, 0
    %717 = vmatpush.bf16.msra.mxu0 0
    %718 = vmatpush.bf16.msra.mxu0 0
    %719 = vmatpush.bf16.msra.mxu0 0
    %720 = vmatpush.bf16.msra.mxu0 0
    %721 = vmatpush.bf16.msra.mxu0 0
    %722 = vmatpush.bf16.msra.mxu0 0
    %723 = vmatpush.bf16.msra.mxu0 0
    %724 = vmatpush.bf16.msra.mxu0 %v700
    %725 = vmatmul.bf16.gmra.mxu0 %v697
    %v726 = vpop.f32.mrf.mxu0
    %v727 = vadd.f32 0.0, %v726
    %v728 = vpop.f32.mrf.mxu0
    %729 = vdwg.mxu0
    %730 = vmatpush.bf16.msra.mxu0 0
    %731 = vmatpush.bf16.msra.mxu0 0
    %732 = vmatpush.bf16.msra.mxu0 0
    %733 = vmatpush.bf16.msra.mxu0 0
    %734 = vmatpush.bf16.msra.mxu0 0
    %735 = vmatpush.bf16.msra.mxu0 0
    %736 = vmatpush.bf16.msra.mxu0 0
    %737 = vmatpush.bf16.msra.mxu0 %v703
    %738 = vmatmul.bf16.gmra.mxu0 %v697
    %v739 = vpop.f32.mrf.mxu0
    %v740 = vadd.f32 0.0, %v739
    %v741 = vpop.f32.mrf.mxu0
    %742 = vdwg.mxu0
    %743 = vmatpush.bf16.msra.mxu0 0
    %744 = vmatpush.bf16.msra.mxu0 0
    %745 = vmatpush.bf16.msra.mxu0 0
    %746 = vmatpush.bf16.msra.mxu0 0
    %747 = vmatpush.bf16.msra.mxu0 0
    %748 = vmatpush.bf16.msra.mxu0 0
    %749 = vmatpush.bf16.msra.mxu0 0
    %750 = vmatpush.bf16.msra.mxu0 %v706
    %751 = vmatmul.bf16.gmra.mxu0 %v697
    %v752 = vpop.f32.mrf.mxu0
    %v753 = vadd.f32 0.0, %v752
    %v754 = vpop.f32.mrf.mxu0
    %755 = vdwg.mxu0
    %756 = vmatpush.bf16.msra.mxu0 0
    %757 = vmatpush.bf16.msra.mxu0 0
    %758 = vmatpush.bf16.msra.mxu0 0
    %759 = vmatpush.bf16.msra.mxu0 0
    %760 = vmatpush.bf16.msra.mxu0 0
    %761 = vmatpush.bf16.msra.mxu0 0
    %762 = vmatpush.bf16.msra.mxu0 0
    %763 = vmatpush.bf16.msra.mxu0 %v709
    %764 = vmatmul.bf16.gmra.mxu0 %v697
    %v765 = vpop.f32.mrf.mxu0
    %v766 = vadd.f32 0.0, %v765
    %v767 = vpop.f32.mrf.mxu0
    %768 = vdwg.mxu0
    %769 = vmatpush.bf16.msra.mxu0 0
    %770 = vmatpush.bf16.msra.mxu0 0
    %771 = vmatpush.bf16.msra.mxu0 0
    %772 = vmatpush.bf16.msra.mxu0 0
    %773 = vmatpush.bf16.msra.mxu0 0
    %774 = vmatpush.bf16.msra.mxu0 0
    %775 = vmatpush.bf16.msra.mxu0 0
    %776 = vmatpush.bf16.msra.mxu0 %v712
    %777 = vmatmul.bf16.gmra.mxu0 %v697
    %v778 = vpop.f32.mrf.mxu0
    %v779 = vadd.f32 0.0, %v778
    %v780 = vpop.f32.mrf.mxu0
    %781 = vdwg.mxu0
    %782 = vmatpush.bf16.msra.mxu0 0
    %783 = vmatpush.bf16.msra.mxu0 0
    %784 = vmatpush.bf16.msra.mxu0 0
    %785 = vmatpush.bf16.msra.mxu0 0
    %786 = vmatpush.bf16.msra.mxu0 0
    %787 = vmatpush.bf16.msra.mxu0 0
    %788 = vmatpush.bf16.msra.mxu0 0
    %789 = vmatpush.bf16.msra.mxu0 %v715
    %790 = vmatmul.bf16.gmra.mxu0 %v697
    %v791 = vpop.f32.mrf.mxu0
    %v792 = vadd.f32 0.0, %v791
    %v793 = vpop.f32.mrf.mxu0
    %794 = vdwg.mxu0
    %v795 = vadd.f32 %v659, %v727
    %v796 = vadd.f32 %v660, %v740
    %v797 = vadd.f32 %v661, %v753
    %v798 = vadd.f32 %v662, %v766
    %v799 = vadd.f32 %v663, %v779
    %v800 = vadd.f32 %v664, %v792
    %v801 = vld [vmem:[%s1 + $0x4] sm:$0xff]
    %v802 = vld [vmem:[%s1 + $0xc] sm:$0xff]
    %v803 = vld [vmem:[%s1 + $0x14] sm:$0xff]
    %807 = vst [vmem:[#allocation1] ss:$2 sm:$0xff] %v801
    %s808 = scalar_lea.vmem [#allocation1], 16
    %809 = vst [vmem:[%s808] ss:$2 sm:$0xff] %v802
    %s810 = scalar_lea.vmem [#allocation1], 32
    %811 = vst [vmem:[%s810] ss:$2 sm:$0xff] %v803
    %v812 = vld.sshfl [vmem:[#allocation1] sm:$0xff pattern:$0x75316420]
    %v813 = vld.sshfl [vmem:[#allocation1 + $0x8] sm:$0xff pattern:$0x75316420]
    %v814 = vld.sshfl [vmem:[#allocation1 + $0x10] sm:$0xff pattern:$0x75316420]
    %v815 = vld.sshfl [vmem:[#allocation1 + $0x18] sm:$0xff pattern:$0x75316420]
    %v816 = vld.sshfl [vmem:[#allocation1 + $0x20] sm:$0xff pattern:$0x75316420]
    %v817 = vld.sshfl [vmem:[#allocation1 + $0x28] sm:$0xff pattern:$0x75316420]
    %v824 = vpack.c.bf16 %v812, %v812
    %v825 = vpack.c.bf16 %v813, %v813
    %v826 = vpack.c.bf16 %v814, %v814
    %v827 = vpack.c.bf16 %v815, %v815
    %v828 = vpack.c.bf16 %v816, %v816
    %v829 = vpack.c.bf16 %v817, %v817
    %s830 = scalar_lea.vmem %s2, 10
    %v831 = vld [vmem:[%s830] sm:$0x3]
    %838 = vrot.lane.b32.xlu0 %v824, 127
    %v839 = vpop.permute.xlu0 %838
    %840 = vrot.lane.b32.xlu0 %v825, 127
    %v841 = vpop.permute.xlu0 %840
    %842 = vrot.lane.b32.xlu0 %v826, 127
    %v843 = vpop.permute.xlu0 %842
    %844 = vrot.lane.b32.xlu0 %v827, 127
    %v845 = vpop.permute.xlu0 %844
    %846 = vrot.lane.b32.xlu0 %v828, 127
    %v847 = vpop.permute.xlu0 %846
    %848 = vrot.lane.b32.xlu0 %v829, 127
    %v849 = vpop.permute.xlu0 %848
    %vm850 = vcmask 1039360
    %v851 = vsel %vm850, %v839, %v841
    %v852 = vsel %vm850, %v841, %v843
    %v853 = vsel %vm850, %v843, %v845
    %v854 = vsel %vm850, %v845, %v847
    %v855 = vsel %vm850, %v847, %v849
    %v857 = vsel %vm110, %v831, 0
    %v860 = vsel %vm114, %v851, 0
    %v863 = vsel %vm114, %v852, 0
    %v866 = vsel %vm114, %v853, 0
    %v869 = vsel %vm114, %v854, 0
    %v872 = vsel %vm114, %v855, 0
    %v875 = vsel %vm114, %v849, 0
    %877 = vmatpush.bf16.msra.mxu0 0
    %878 = vmatpush.bf16.msra.mxu0 0
    %879 = vmatpush.bf16.msra.mxu0 0
    %880 = vmatpush.bf16.msra.mxu0 0
    %881 = vmatpush.bf16.msra.mxu0 0
    %882 = vmatpush.bf16.msra.mxu0 0
    %883 = vmatpush.bf16.msra.mxu0 0
    %884 = vmatpush.bf16.msra.mxu0 %v860
    %885 = vmatmul.bf16.gmra.mxu0 %v857
    %v886 = vpop.f32.mrf.mxu0
    %v887 = vadd.f32 0.0, %v886
    %v888 = vpop.f32.mrf.mxu0
    %889 = vdwg.mxu0
    %890 = vmatpush.bf16.msra.mxu0 0
    %891 = vmatpush.bf16.msra.mxu0 0
    %892 = vmatpush.bf16.msra.mxu0 0
    %893 = vmatpush.bf16.msra.mxu0 0
    %894 = vmatpush.bf16.msra.mxu0 0
    %895 = vmatpush.bf16.msra.mxu0 0
    %896 = vmatpush.bf16.msra.mxu0 0
    %897 = vmatpush.bf16.msra.mxu0 %v863
    %898 = vmatmul.bf16.gmra.mxu0 %v857
    %v899 = vpop.f32.mrf.mxu0
    %v900 = vadd.f32 0.0, %v899
    %v901 = vpop.f32.mrf.mxu0
    %902 = vdwg.mxu0
    %903 = vmatpush.bf16.msra.mxu0 0
    %904 = vmatpush.bf16.msra.mxu0 0
    %905 = vmatpush.bf16.msra.mxu0 0
    %906 = vmatpush.bf16.msra.mxu0 0
    %907 = vmatpush.bf16.msra.mxu0 0
    %908 = vmatpush.bf16.msra.mxu0 0
    %909 = vmatpush.bf16.msra.mxu0 0
    %910 = vmatpush.bf16.msra.mxu0 %v866
    %911 = vmatmul.bf16.gmra.mxu0 %v857
    %v912 = vpop.f32.mrf.mxu0
    %v913 = vadd.f32 0.0, %v912
    %v914 = vpop.f32.mrf.mxu0
    %915 = vdwg.mxu0
    %916 = vmatpush.bf16.msra.mxu0 0
    %917 = vmatpush.bf16.msra.mxu0 0
    %918 = vmatpush.bf16.msra.mxu0 0
    %919 = vmatpush.bf16.msra.mxu0 0
    %920 = vmatpush.bf16.msra.mxu0 0
    %921 = vmatpush.bf16.msra.mxu0 0
    %922 = vmatpush.bf16.msra.mxu0 0
    %923 = vmatpush.bf16.msra.mxu0 %v869
    %924 = vmatmul.bf16.gmra.mxu0 %v857
    %v925 = vpop.f32.mrf.mxu0
    %v926 = vadd.f32 0.0, %v925
    %v927 = vpop.f32.mrf.mxu0
    %928 = vdwg.mxu0
    %929 = vmatpush.bf16.msra.mxu0 0
    %930 = vmatpush.bf16.msra.mxu0 0
    %931 = vmatpush.bf16.msra.mxu0 0
    %932 = vmatpush.bf16.msra.mxu0 0
    %933 = vmatpush.bf16.msra.mxu0 0
    %934 = vmatpush.bf16.msra.mxu0 0
    %935 = vmatpush.bf16.msra.mxu0 0
    %936 = vmatpush.bf16.msra.mxu0 %v872
    %937 = vmatmul.bf16.gmra.mxu0 %v857
    %v938 = vpop.f32.mrf.mxu0
    %v939 = vadd.f32 0.0, %v938
    %v940 = vpop.f32.mrf.mxu0
    %941 = vdwg.mxu0
    %942 = vmatpush.bf16.msra.mxu0 0
    %943 = vmatpush.bf16.msra.mxu0 0
    %944 = vmatpush.bf16.msra.mxu0 0
    %945 = vmatpush.bf16.msra.mxu0 0
    %946 = vmatpush.bf16.msra.mxu0 0
    %947 = vmatpush.bf16.msra.mxu0 0
    %948 = vmatpush.bf16.msra.mxu0 0
    %949 = vmatpush.bf16.msra.mxu0 %v875
    %950 = vmatmul.bf16.gmra.mxu0 %v857
    %v951 = vpop.f32.mrf.mxu0
    %v952 = vadd.f32 0.0, %v951
    %v953 = vpop.f32.mrf.mxu0
    %954 = vdwg.mxu0
    %v955 = vadd.f32 %v795, %v887
    %v956 = vadd.f32 %v796, %v900
    %v957 = vadd.f32 %v797, %v913
    %v958 = vadd.f32 %v798, %v926
    %v959 = vadd.f32 %v799, %v939
    %v960 = vadd.f32 %v800, %v952
    %v961 = vld [vmem:[%s1 + $0x4] sm:$0xff]
    %v962 = vld [vmem:[%s1 + $0xc] sm:$0xff]
    %v963 = vld [vmem:[%s1 + $0x14] sm:$0xff]
    %967 = vst [vmem:[#allocation1] ss:$2 sm:$0xff] %v961
    %s968 = scalar_lea.vmem [#allocation1], 16
    %969 = vst [vmem:[%s968] ss:$2 sm:$0xff] %v962
    %s970 = scalar_lea.vmem [#allocation1], 32
    %971 = vst [vmem:[%s970] ss:$2 sm:$0xff] %v963
    %v972 = vld.sshfl [vmem:[#allocation1] sm:$0xff pattern:$0x75316420]
    %v973 = vld.sshfl [vmem:[#allocation1 + $0x8] sm:$0xff pattern:$0x75316420]
    %v974 = vld.sshfl [vmem:[#allocation1 + $0x10] sm:$0xff pattern:$0x75316420]
    %v975 = vld.sshfl [vmem:[#allocation1 + $0x18] sm:$0xff pattern:$0x75316420]
    %v976 = vld.sshfl [vmem:[#allocation1 + $0x20] sm:$0xff pattern:$0x75316420]
    %v977 = vld.sshfl [vmem:[#allocation1 + $0x28] sm:$0xff pattern:$0x75316420]
    %v984 = vpack.c.bf16 %v972, %v972
    %v985 = vpack.c.bf16 %v973, %v973
    %v986 = vpack.c.bf16 %v974, %v974
    %v987 = vpack.c.bf16 %v975, %v975
    %v988 = vpack.c.bf16 %v976, %v976
    %v989 = vpack.c.bf16 %v977, %v977
    %s990 = scalar_lea.vmem %s2, 12
    %v991 = vld [vmem:[%s990] sm:$0x3]
    %998 = vrot.lane.b32.xlu0 %v984, 111
    %v999 = vpop.permute.xlu0 %998
    %1000 = vrot.lane.b32.xlu0 %v985, 111
    %v1001 = vpop.permute.xlu0 %1000
    %1002 = vrot.lane.b32.xlu0 %v986, 111
    %v1003 = vpop.permute.xlu0 %1002
    %1004 = vrot.lane.b32.xlu0 %v987, 111
    %v1005 = vpop.permute.xlu0 %1004
    %1006 = vrot.lane.b32.xlu0 %v988, 111
    %v1007 = vpop.permute.xlu0 %1006
    %1008 = vrot.lane.b32.xlu0 %v989, 111
    %v1009 = vpop.permute.xlu0 %1008
    %vm1010 = vcmask 908288
    %v1011 = vsel %vm1010, %v999, %v1001
    %v1012 = vsel %vm1010, %v1001, %v1003
    %v1013 = vsel %vm1010, %v1003, %v1005
    %v1014 = vsel %vm1010, %v1005, %v1007
    %v1015 = vsel %vm1010, %v1007, %v1009
    %v1017 = vsel %vm110, %v991, 0
    %v1020 = vsel %vm114, %v1011, 0
    %v1023 = vsel %vm114, %v1012, 0
    %v1026 = vsel %vm114, %v1013, 0
    %v1029 = vsel %vm114, %v1014, 0
    %v1032 = vsel %vm114, %v1015, 0
    %v1035 = vsel %vm114, %v1009, 0
    %1037 = vmatpush.bf16.msra.mxu0 0
    %1038 = vmatpush.bf16.msra.mxu0 0
    %1039 = vmatpush.bf16.msra.mxu0 0
    %1040 = vmatpush.bf16.msra.mxu0 0
    %1041 = vmatpush.bf16.msra.mxu0 0
    %1042 = vmatpush.bf16.msra.mxu0 0
    %1043 = vmatpush.bf16.msra.mxu0 0
    %1044 = vmatpush.bf16.msra.mxu0 %v1020
    %1045 = vmatmul.bf16.gmra.mxu0 %v1017
    %v1046 = vpop.f32.mrf.mxu0
    %v1047 = vadd.f32 0.0, %v1046
    %v1048 = vpop.f32.mrf.mxu0
    %1049 = vdwg.mxu0
    %1050 = vmatpush.bf16.msra.mxu0 0
    %1051 = vmatpush.bf16.msra.mxu0 0
    %1052 = vmatpush.bf16.msra.mxu0 0
    %1053 = vmatpush.bf16.msra.mxu0 0
    %1054 = vmatpush.bf16.msra.mxu0 0
    %1055 = vmatpush.bf16.msra.mxu0 0
    %1056 = vmatpush.bf16.msra.mxu0 0
    %1057 = vmatpush.bf16.msra.mxu0 %v1023
    %1058 = vmatmul.bf16.gmra.mxu0 %v1017
    %v1059 = vpop.f32.mrf.mxu0
    %v1060 = vadd.f32 0.0, %v1059
    %v1061 = vpop.f32.mrf.mxu0
    %1062 = vdwg.mxu0
    %1063 = vmatpush.bf16.msra.mxu0 0
    %1064 = vmatpush.bf16.msra.mxu0 0
    %1065 = vmatpush.bf16.msra.mxu0 0
    %1066 = vmatpush.bf16.msra.mxu0 0
    %1067 = vmatpush.bf16.msra.mxu0 0
    %1068 = vmatpush.bf16.msra.mxu0 0
    %1069 = vmatpush.bf16.msra.mxu0 0
    %1070 = vmatpush.bf16.msra.mxu0 %v1026
    %1071 = vmatmul.bf16.gmra.mxu0 %v1017
    %v1072 = vpop.f32.mrf.mxu0
    %v1073 = vadd.f32 0.0, %v1072
    %v1074 = vpop.f32.mrf.mxu0
    %1075 = vdwg.mxu0
    %1076 = vmatpush.bf16.msra.mxu0 0
    %1077 = vmatpush.bf16.msra.mxu0 0
    %1078 = vmatpush.bf16.msra.mxu0 0
    %1079 = vmatpush.bf16.msra.mxu0 0
    %1080 = vmatpush.bf16.msra.mxu0 0
    %1081 = vmatpush.bf16.msra.mxu0 0
    %1082 = vmatpush.bf16.msra.mxu0 0
    %1083 = vmatpush.bf16.msra.mxu0 %v1029
    %1084 = vmatmul.bf16.gmra.mxu0 %v1017
    %v1085 = vpop.f32.mrf.mxu0
    %v1086 = vadd.f32 0.0, %v1085
    %v1087 = vpop.f32.mrf.mxu0
    %1088 = vdwg.mxu0
    %1089 = vmatpush.bf16.msra.mxu0 0
    %1090 = vmatpush.bf16.msra.mxu0 0
    %1091 = vmatpush.bf16.msra.mxu0 0
    %1092 = vmatpush.bf16.msra.mxu0 0
    %1093 = vmatpush.bf16.msra.mxu0 0
    %1094 = vmatpush.bf16.msra.mxu0 0
    %1095 = vmatpush.bf16.msra.mxu0 0
    %1096 = vmatpush.bf16.msra.mxu0 %v1032
    %1097 = vmatmul.bf16.gmra.mxu0 %v1017
    %v1098 = vpop.f32.mrf.mxu0
    %v1099 = vadd.f32 0.0, %v1098
    %v1100 = vpop.f32.mrf.mxu0
    %1101 = vdwg.mxu0
    %1102 = vmatpush.bf16.msra.mxu0 0
    %1103 = vmatpush.bf16.msra.mxu0 0
    %1104 = vmatpush.bf16.msra.mxu0 0
    %1105 = vmatpush.bf16.msra.mxu0 0
    %1106 = vmatpush.bf16.msra.mxu0 0
    %1107 = vmatpush.bf16.msra.mxu0 0
    %1108 = vmatpush.bf16.msra.mxu0 0
    %1109 = vmatpush.bf16.msra.mxu0 %v1035
    %1110 = vmatmul.bf16.gmra.mxu0 %v1017
    %v1111 = vpop.f32.mrf.mxu0
    %v1112 = vadd.f32 0.0, %v1111
    %v1113 = vpop.f32.mrf.mxu0
    %1114 = vdwg.mxu0
    %v1115 = vadd.f32 %v955, %v1047
    %v1116 = vadd.f32 %v956, %v1060
    %v1117 = vadd.f32 %v957, %v1073
    %v1118 = vadd.f32 %v958, %v1086
    %v1119 = vadd.f32 %v959, %v1099
    %v1120 = vadd.f32 %v960, %v1112
    %v1121 = vld [vmem:[%s1 + $0x4] sm:$0xff]
    %v1122 = vld [vmem:[%s1 + $0xc] sm:$0xff]
    %v1123 = vld [vmem:[%s1 + $0x14] sm:$0xff]
    %1127 = vst [vmem:[#allocation1] ss:$2 sm:$0xff] %v1121
    %s1128 = scalar_lea.vmem [#allocation1], 16
    %1129 = vst [vmem:[%s1128] ss:$2 sm:$0xff] %v1122
    %s1130 = scalar_lea.vmem [#allocation1], 32
    %1131 = vst [vmem:[%s1130] ss:$2 sm:$0xff] %v1123
    %v1132 = vld.sshfl [vmem:[#allocation1] sm:$0xff pattern:$0x75316420]
    %v1133 = vld.sshfl [vmem:[#allocation1 + $0x8] sm:$0xff pattern:$0x75316420]
    %v1134 = vld.sshfl [vmem:[#allocation1 + $0x10] sm:$0xff pattern:$0x75316420]
    %v1135 = vld.sshfl [vmem:[#allocation1 + $0x18] sm:$0xff pattern:$0x75316420]
    %v1136 = vld.sshfl [vmem:[#allocation1 + $0x20] sm:$0xff pattern:$0x75316420]
    %v1137 = vld.sshfl [vmem:[#allocation1 + $0x28] sm:$0xff pattern:$0x75316420]
    %v1144 = vpack.c.bf16 %v1132, %v1132
    %v1145 = vpack.c.bf16 %v1133, %v1133
    %v1146 = vpack.c.bf16 %v1134, %v1134
    %v1147 = vpack.c.bf16 %v1135, %v1135
    %v1148 = vpack.c.bf16 %v1136, %v1136
    %v1149 = vpack.c.bf16 %v1137, %v1137
    %s1150 = scalar_lea.vmem %s2, 14
    %v1151 = vld [vmem:[%s1150] sm:$0x3]
    %1158 = vrot.lane.b32.xlu0 %v1144, 110
    %v1159 = vpop.permute.xlu0 %1158
    %1160 = vrot.lane.b32.xlu0 %v1145, 110
    %v1161 = vpop.permute.xlu0 %1160
    %1162 = vrot.lane.b32.xlu0 %v1146, 110
    %v1163 = vpop.permute.xlu0 %1162
    %1164 = vrot.lane.b32.xlu0 %v1147, 110
    %v1165 = vpop.permute.xlu0 %1164
    %1166 = vrot.lane.b32.xlu0 %v1148, 110
    %v1167 = vpop.permute.xlu0 %1166
    %1168 = vrot.lane.b32.xlu0 %v1149, 110
    %v1169 = vpop.permute.xlu0 %1168
    %vm1170 = vcmask 900096
    %v1171 = vsel %vm1170, %v1159, %v1161
    %v1172 = vsel %vm1170, %v1161, %v1163
    %v1173 = vsel %vm1170, %v1163, %v1165
    %v1174 = vsel %vm1170, %v1165, %v1167
    %v1175 = vsel %vm1170, %v1167, %v1169
    %v1177 = vsel %vm110, %v1151, 0
    %v1180 = vsel %vm114, %v1171, 0
    %v1183 = vsel %vm114, %v1172, 0
    %v1186 = vsel %vm114, %v1173, 0
    %v1189 = vsel %vm114, %v1174, 0
    %v1192 = vsel %vm114, %v1175, 0
    %v1195 = vsel %vm114, %v1169, 0
    %1197 = vmatpush.bf16.msra.mxu0 0
    %1198 = vmatpush.bf16.msra.mxu0 0
    %1199 = vmatpush.bf16.msra.mxu0 0
    %1200 = vmatpush.bf16.msra.mxu0 0
    %1201 = vmatpush.bf16.msra.mxu0 0
    %1202 = vmatpush.bf16.msra.mxu0 0
    %1203 = vmatpush.bf16.msra.mxu0 0
    %1204 = vmatpush.bf16.msra.mxu0 %v1180
    %1205 = vmatmul.bf16.gmra.mxu0 %v1177
    %v1206 = vpop.f32.mrf.mxu0
    %v1207 = vadd.f32 0.0, %v1206
    %v1208 = vpop.f32.mrf.mxu0
    %1209 = vdwg.mxu0
    %1210 = vmatpush.bf16.msra.mxu0 0
    %1211 = vmatpush.bf16.msra.mxu0 0
    %1212 = vmatpush.bf16.msra.mxu0 0
    %1213 = vmatpush.bf16.msra.mxu0 0
    %1214 = vmatpush.bf16.msra.mxu0 0
    %1215 = vmatpush.bf16.msra.mxu0 0
    %1216 = vmatpush.bf16.msra.mxu0 0
    %1217 = vmatpush.bf16.msra.mxu0 %v1183
    %1218 = vmatmul.bf16.gmra.mxu0 %v1177
    %v1219 = vpop.f32.mrf.mxu0
    %v1220 = vadd.f32 0.0, %v1219
    %v1221 = vpop.f32.mrf.mxu0
    %1222 = vdwg.mxu0
    %1223 = vmatpush.bf16.msra.mxu0 0
    %1224 = vmatpush.bf16.msra.mxu0 0
    %1225 = vmatpush.bf16.msra.mxu0 0
    %1226 = vmatpush.bf16.msra.mxu0 0
    %1227 = vmatpush.bf16.msra.mxu0 0
    %1228 = vmatpush.bf16.msra.mxu0 0
    %1229 = vmatpush.bf16.msra.mxu0 0
    %1230 = vmatpush.bf16.msra.mxu0 %v1186
    %1231 = vmatmul.bf16.gmra.mxu0 %v1177
    %v1232 = vpop.f32.mrf.mxu0
    %v1233 = vadd.f32 0.0, %v1232
    %v1234 = vpop.f32.mrf.mxu0
    %1235 = vdwg.mxu0
    %1236 = vmatpush.bf16.msra.mxu0 0
    %1237 = vmatpush.bf16.msra.mxu0 0
    %1238 = vmatpush.bf16.msra.mxu0 0
    %1239 = vmatpush.bf16.msra.mxu0 0
    %1240 = vmatpush.bf16.msra.mxu0 0
    %1241 = vmatpush.bf16.msra.mxu0 0
    %1242 = vmatpush.bf16.msra.mxu0 0
    %1243 = vmatpush.bf16.msra.mxu0 %v1189
    %1244 = vmatmul.bf16.gmra.mxu0 %v1177
    %v1245 = vpop.f32.mrf.mxu0
    %v1246 = vadd.f32 0.0, %v1245
    %v1247 = vpop.f32.mrf.mxu0
    %1248 = vdwg.mxu0
    %1249 = vmatpush.bf16.msra.mxu0 0
    %1250 = vmatpush.bf16.msra.mxu0 0
    %1251 = vmatpush.bf16.msra.mxu0 0
    %1252 = vmatpush.bf16.msra.mxu0 0
    %1253 = vmatpush.bf16.msra.mxu0 0
    %1254 = vmatpush.bf16.msra.mxu0 0
    %1255 = vmatpush.bf16.msra.mxu0 0
    %1256 = vmatpush.bf16.msra.mxu0 %v1192
    %1257 = vmatmul.bf16.gmra.mxu0 %v1177
    %v1258 = vpop.f32.mrf.mxu0
    %v1259 = vadd.f32 0.0, %v1258
    %v1260 = vpop.f32.mrf.mxu0
    %1261 = vdwg.mxu0
    %1262 = vmatpush.bf16.msra.mxu0 0
    %1263 = vmatpush.bf16.msra.mxu0 0
    %1264 = vmatpush.bf16.msra.mxu0 0
    %1265 = vmatpush.bf16.msra.mxu0 0
    %1266 = vmatpush.bf16.msra.mxu0 0
    %1267 = vmatpush.bf16.msra.mxu0 0
    %1268 = vmatpush.bf16.msra.mxu0 0
    %1269 = vmatpush.bf16.msra.mxu0 %v1195
    %1270 = vmatmul.bf16.gmra.mxu0 %v1177
    %v1271 = vpop.f32.mrf.mxu0
    %v1272 = vadd.f32 0.0, %v1271
    %v1273 = vpop.f32.mrf.mxu0
    %1274 = vdwg.mxu0
    %v1275 = vadd.f32 %v1115, %v1207
    %v1276 = vadd.f32 %v1116, %v1220
    %v1277 = vadd.f32 %v1117, %v1233
    %v1278 = vadd.f32 %v1118, %v1246
    %v1279 = vadd.f32 %v1119, %v1259
    %v1280 = vadd.f32 %v1120, %v1272
    %v1281 = vld [vmem:[%s1 + $0x4] sm:$0xff]
    %v1282 = vld [vmem:[%s1 + $0xc] sm:$0xff]
    %v1283 = vld [vmem:[%s1 + $0x14] sm:$0xff]
    %1287 = vst [vmem:[#allocation1] ss:$2 sm:$0xff] %v1281
    %s1288 = scalar_lea.vmem [#allocation1], 16
    %1289 = vst [vmem:[%s1288] ss:$2 sm:$0xff] %v1282
    %s1290 = scalar_lea.vmem [#allocation1], 32
    %1291 = vst [vmem:[%s1290] ss:$2 sm:$0xff] %v1283
    %v1292 = vld.sshfl [vmem:[#allocation1] sm:$0xff pattern:$0x75316420]
    %v1293 = vld.sshfl [vmem:[#allocation1 + $0x8] sm:$0xff pattern:$0x75316420]
    %v1294 = vld.sshfl [vmem:[#allocation1 + $0x10] sm:$0xff pattern:$0x75316420]
    %v1295 = vld.sshfl [vmem:[#allocation1 + $0x18] sm:$0xff pattern:$0x75316420]
    %v1296 = vld.sshfl [vmem:[#allocation1 + $0x20] sm:$0xff pattern:$0x75316420]
    %v1297 = vld.sshfl [vmem:[#allocation1 + $0x28] sm:$0xff pattern:$0x75316420]
    %v1304 = vpack.c.bf16 %v1292, %v1292
    %v1305 = vpack.c.bf16 %v1293, %v1293
    %v1306 = vpack.c.bf16 %v1294, %v1294
    %v1307 = vpack.c.bf16 %v1295, %v1295
    %v1308 = vpack.c.bf16 %v1296, %v1296
    %v1309 = vpack.c.bf16 %v1297, %v1297
    %s1310 = scalar_lea.vmem %s2, 16
    %v1311 = vld [vmem:[%s1310] sm:$0x3]
    %1318 = vrot.lane.b32.xlu0 %v1304, 109
    %v1319 = vpop.permute.xlu0 %1318
    %1320 = vrot.lane.b32.xlu0 %v1305, 109
    %v1321 = vpop.permute.xlu0 %1320
    %1322 = vrot.lane.b32.xlu0 %v1306, 109
    %v1323 = vpop.permute.xlu0 %1322
    %1324 = vrot.lane.b32.xlu0 %v1307, 109
    %v1325 = vpop.permute.xlu0 %1324
    %1326 = vrot.lane.b32.xlu0 %v1308, 109
    %v1327 = vpop.permute.xlu0 %1326
    %1328 = vrot.lane.b32.xlu0 %v1309, 109
    %v1329 = vpop.permute.xlu0 %1328
    %vm1330 = vcmask 891904
    %v1331 = vsel %vm1330, %v1319, %v1321
    %v1332 = vsel %vm1330, %v1321, %v1323
    %v1333 = vsel %vm1330, %v1323, %v1325
    %v1334 = vsel %vm1330, %v1325, %v1327
    %v1335 = vsel %vm1330, %v1327, %v1329
    %v1337 = vsel %vm110, %v1311, 0
    %v1340 = vsel %vm114, %v1331, 0
    %v1343 = vsel %vm114, %v1332, 0
    %v1346 = vsel %vm114, %v1333, 0
    %v1349 = vsel %vm114, %v1334, 0
    %v1352 = vsel %vm114, %v1335, 0
    %v1355 = vsel %vm114, %v1329, 0
    %1357 = vmatpush.bf16.msra.mxu0 0
    %1358 = vmatpush.bf16.msra.mxu0 0
    %1359 = vmatpush.bf16.msra.mxu0 0
    %1360 = vmatpush.bf16.msra.mxu0 0
    %1361 = vmatpush.bf16.msra.mxu0 0
    %1362 = vmatpush.bf16.msra.mxu0 0
    %1363 = vmatpush.bf16.msra.mxu0 0
    %1364 = vmatpush.bf16.msra.mxu0 %v1340
    %1365 = vmatmul.bf16.gmra.mxu0 %v1337
    %v1366 = vpop.f32.mrf.mxu0
    %v1367 = vadd.f32 0.0, %v1366
    %v1368 = vpop.f32.mrf.mxu0
    %1369 = vdwg.mxu0
    %1370 = vmatpush.bf16.msra.mxu0 0
    %1371 = vmatpush.bf16.msra.mxu0 0
    %1372 = vmatpush.bf16.msra.mxu0 0
    %1373 = vmatpush.bf16.msra.mxu0 0
    %1374 = vmatpush.bf16.msra.mxu0 0
    %1375 = vmatpush.bf16.msra.mxu0 0
    %1376 = vmatpush.bf16.msra.mxu0 0
    %1377 = vmatpush.bf16.msra.mxu0 %v1343
    %1378 = vmatmul.bf16.gmra.mxu0 %v1337
    %v1379 = vpop.f32.mrf.mxu0
    %v1380 = vadd.f32 0.0, %v1379
    %v1381 = vpop.f32.mrf.mxu0
    %1382 = vdwg.mxu0
    %1383 = vmatpush.bf16.msra.mxu0 0
    %1384 = vmatpush.bf16.msra.mxu0 0
    %1385 = vmatpush.bf16.msra.mxu0 0
    %1386 = vmatpush.bf16.msra.mxu0 0
    %1387 = vmatpush.bf16.msra.mxu0 0
    %1388 = vmatpush.bf16.msra.mxu0 0
    %1389 = vmatpush.bf16.msra.mxu0 0
    %1390 = vmatpush.bf16.msra.mxu0 %v1346
    %1391 = vmatmul.bf16.gmra.mxu0 %v1337
    %v1392 = vpop.f32.mrf.mxu0
    %v1393 = vadd.f32 0.0, %v1392
    %v1394 = vpop.f32.mrf.mxu0
    %1395 = vdwg.mxu0
    %1396 = vmatpush.bf16.msra.mxu0 0
    %1397 = vmatpush.bf16.msra.mxu0 0
    %1398 = vmatpush.bf16.msra.mxu0 0
    %1399 = vmatpush.bf16.msra.mxu0 0
    %1400 = vmatpush.bf16.msra.mxu0 0
    %1401 = vmatpush.bf16.msra.mxu0 0
    %1402 = vmatpush.bf16.msra.mxu0 0
    %1403 = vmatpush.bf16.msra.mxu0 %v1349
    %1404 = vmatmul.bf16.gmra.mxu0 %v1337
    %v1405 = vpop.f32.mrf.mxu0
    %v1406 = vadd.f32 0.0, %v1405
    %v1407 = vpop.f32.mrf.mxu0
    %1408 = vdwg.mxu0
    %1409 = vmatpush.bf16.msra.mxu0 0
    %1410 = vmatpush.bf16.msra.mxu0 0
    %1411 = vmatpush.bf16.msra.mxu0 0
    %1412 = vmatpush.bf16.msra.mxu0 0
    %1413 = vmatpush.bf16.msra.mxu0 0
    %1414 = vmatpush.bf16.msra.mxu0 0
    %1415 = vmatpush.bf16.msra.mxu0 0
    %1416 = vmatpush.bf16.msra.mxu0 %v1352
    %1417 = vmatmul.bf16.gmra.mxu0 %v1337
    %v1418 = vpop.f32.mrf.mxu0
    %v1419 = vadd.f32 0.0, %v1418
    %v1420 = vpop.f32.mrf.mxu0
    %1421 = vdwg.mxu0
    %1422 = vmatpush.bf16.msra.mxu0 0
    %1423 = vmatpush.bf16.msra.mxu0 0
    %1424 = vmatpush.bf16.msra.mxu0 0
    %1425 = vmatpush.bf16.msra.mxu0 0
    %1426 = vmatpush.bf16.msra.mxu0 0
    %1427 = vmatpush.bf16.msra.mxu0 0
    %1428 = vmatpush.bf16.msra.mxu0 0
    %1429 = vmatpush.bf16.msra.mxu0 %v1355
    %1430 = vmatmul.bf16.gmra.mxu0 %v1337
    %v1431 = vpop.f32.mrf.mxu0
    %v1432 = vadd.f32 0.0, %v1431
    %v1433 = vpop.f32.mrf.mxu0
    %1434 = vdwg.mxu0
    %v1435 = vadd.f32 %v1275, %v1367
    %v1436 = vadd.f32 %v1276, %v1380
    %v1437 = vadd.f32 %v1277, %v1393
    %v1438 = vadd.f32 %v1278, %v1406
    %v1439 = vadd.f32 %v1279, %v1419
    %v1440 = vadd.f32 %v1280, %v1432
    %v1441 = vld [vmem:[%s3] sm:$0xf]
    %1443 = vset.pattern.permute.xlu0 0
    %1444 = vperm.xlu0 %1443, %v1441
    %v1445 = vpop.permute.xlu0 %1444
    %v1447 = vadd.f32 %v1435, %v1445
    %v1448 = vadd.f32 %v1436, %v1445
    %v1449 = vadd.f32 %v1437, %v1445
    %v1450 = vadd.f32 %v1438, %v1445
    %v1451 = vadd.f32 %v1439, %v1445
    %v1452 = vadd.f32 %v1440, %v1445
    %v1453 = vmax.f32 %v1447, 0.0
    %v1454 = vmax.f32 %v1448, 0.0
    %v1455 = vmax.f32 %v1449, 0.0
    %v1456 = vmax.f32 %v1450, 0.0
    %v1457 = vmax.f32 %v1451, 0.0
    %v1458 = vmax.f32 %v1452, 0.0
    %v1459 = vld [vmem:[%s0] sm:$0x3f]
    %v1461 = vperm.slane %v1459, 0
    %v1462 = vperm.slane %v1459, 1
    %v1463 = vperm.slane %v1459, 2
    %v1464 = vperm.slane %v1459, 3
    %v1465 = vperm.slane %v1459, 4
    %v1466 = vperm.slane %v1459, 5
    %v1473 = vmul.f32 %v1453, %v1461
    %v1474 = vmul.f32 %v1454, %v1462
    %v1475 = vmul.f32 %v1455, %v1463
    %v1476 = vmul.f32 %v1456, %v1464
    %v1477 = vmul.f32 %v1457, %v1465
    %v1478 = vmul.f32 %v1458, %v1466
    %1479 = vst [vmem:[#allocation2] sm:$0x3] 0
    %vm1480 = vcmask 1041472
    %1481 = vst.msk [vmem:[#allocation2 + $0xc] sm:$0x3] %vm1480, 0
    %v1482 = vpack.c.bf16 %v1474, %v1473
    %v1483 = vpack.c.bf16 %v1476, %v1475
    %v1484 = vpack.c.bf16 %v1478, %v1477
    %v1488 = vrot.slane %v1482, 2
    %v1489 = vrot.slane %v1483, 4
    %v1490 = vrot.slane %v1483, 6
    %v1491 = vrot.slane %v1484, 2
    %v1494 = vsel %vm114, %v1482, %v1488
    %vm1495 = vcmask 1045508
    %v1498 = vsel %vm1495, %v1489, %v1490
    %vm1499 = vcmask 1043456
    %v1500 = vsel %vm1499, %v1494, %v1498
    %v1503 = vsel %vm114, %v1484, %v1491
    %1506 = vst [vmem:[#allocation2 + $0x2] sm:$0xff] %v1500
    %vm1507 = vcmask 60418
    %vm1508 = vmor %vm1507, %vm114
    %1509 = vst.msk [vmem:[#allocation2 + $0xa] sm:$0xf] %vm1508, %v1503
    %v1510 = vld [vmem:[%s4] sm:$0x3]
    %v1511 = vld [vmem:[#allocation2] sm:$0xff]
    %v1512 = vld [vmem:[#allocation2 + $0x8] sm:$0xf]
    %s1513 = scalar_lea.vmem %s4, 2
    %v1514 = vld [vmem:[%s1513] sm:$0x3]
    %1516 = vst [vmem:[#allocation1] ss:$4 sm:$0xff] %v1511
    %s1518 = scalar_lea.vmem [#allocation1], 32
    %1519 = vst [vmem:[%s1518] ss:$4 sm:$0xff] %v1512
    %v1520 = vld.sshfl [vmem:[#allocation1] sm:$0xff pattern:$0x73625140]
    %v1522 = vld.sshfl [vmem:[#allocation1 + $0x8] sm:$0xff pattern:$0x73625140]
    %v1524 = vld.sshfl [vmem:[#allocation1 + $0x10] sm:$0xff pattern:$0x73625140]
    %v1526 = vld.sshfl [vmem:[#allocation1 + $0x18] sm:$0xff pattern:$0x73625140]
    %v1528 = vld.sshfl [vmem:[#allocation1 + $0x20] sm:$0xff pattern:$0x73625140]
    %v1530 = vld.sshfl [vmem:[#allocation1 + $0x28] sm:$0xff pattern:$0x73625140]
    %1532 = vrot.lane.b32.xlu0 %v1520, 18
    %v1533 = vpop.permute.xlu0 %1532
    %1534 = vrot.lane.b32.xlu0 %v1522, 18
    %v1535 = vpop.permute.xlu0 %1534
    %1536 = vrot.lane.b32.xlu0 %v1524, 18
    %v1537 = vpop.permute.xlu0 %1536
    %1538 = vrot.lane.b32.xlu0 %v1526, 18
    %v1539 = vpop.permute.xlu0 %1538
    %1540 = vrot.lane.b32.xlu0 %v1528, 18
    %v1541 = vpop.permute.xlu0 %1540
    %1542 = vrot.lane.b32.xlu0 %v1530, 18
    %v1543 = vpop.permute.xlu0 %1542
    %v1544 = vsel %vm104, %v1533, %v1535
    %v1545 = vsel %vm104, %v1535, %v1537
    %v1546 = vsel %vm104, %v1537, %v1539
    %v1547 = vsel %vm104, %v1539, %v1541
    %v1548 = vsel %vm104, %v1541, %v1543
    %v1550 = vsel %vm110, %v1514, 0
    %v1553 = vsel %vm114, %v1544, 0
    %v1556 = vsel %vm114, %v1545, 0
    %v1559 = vsel %vm114, %v1546, 0
    %v1562 = vsel %vm114, %v1547, 0
    %v1565 = vsel %vm114, %v1548, 0
    %v1568 = vsel %vm114, %v1543, 0
    %1570 = vmatpush.bf16.msra.mxu0 0
    %1571 = vmatpush.bf16.msra.mxu0 0
    %1572 = vmatpush.bf16.msra.mxu0 0
    %1573 = vmatpush.bf16.msra.mxu0 0
    %1574 = vmatpush.bf16.msra.mxu0 0
    %1575 = vmatpush.bf16.msra.mxu0 0
    %1576 = vmatpush.bf16.msra.mxu0 0
    %1577 = vmatpush.bf16.msra.mxu0 %v1553
    %1578 = vmatmul.bf16.gmra.mxu0 %v1550
    %v1579 = vpop.f32.mrf.mxu0
    %v1580 = vadd.f32 0.0, %v1579
    %v1581 = vpop.f32.mrf.mxu0
    %1582 = vdwg.mxu0
    %1583 = vmatpush.bf16.msra.mxu0 0
    %1584 = vmatpush.bf16.msra.mxu0 0
    %1585 = vmatpush.bf16.msra.mxu0 0
    %1586 = vmatpush.bf16.msra.mxu0 0
    %1587 = vmatpush.bf16.msra.mxu0 0
    %1588 = vmatpush.bf16.msra.mxu0 0
    %1589 = vmatpush.bf16.msra.mxu0 0
    %1590 = vmatpush.bf16.msra.mxu0 %v1556
    %1591 = vmatmul.bf16.gmra.mxu0 %v1550
    %v1592 = vpop.f32.mrf.mxu0
    %v1593 = vadd.f32 0.0, %v1592
    %v1594 = vpop.f32.mrf.mxu0
    %1595 = vdwg.mxu0
    %1596 = vmatpush.bf16.msra.mxu0 0
    %1597 = vmatpush.bf16.msra.mxu0 0
    %1598 = vmatpush.bf16.msra.mxu0 0
    %1599 = vmatpush.bf16.msra.mxu0 0
    %1600 = vmatpush.bf16.msra.mxu0 0
    %1601 = vmatpush.bf16.msra.mxu0 0
    %1602 = vmatpush.bf16.msra.mxu0 0
    %1603 = vmatpush.bf16.msra.mxu0 %v1559
    %1604 = vmatmul.bf16.gmra.mxu0 %v1550
    %v1605 = vpop.f32.mrf.mxu0
    %v1606 = vadd.f32 0.0, %v1605
    %v1607 = vpop.f32.mrf.mxu0
    %1608 = vdwg.mxu0
    %1609 = vmatpush.bf16.msra.mxu0 0
    %1610 = vmatpush.bf16.msra.mxu0 0
    %1611 = vmatpush.bf16.msra.mxu0 0
    %1612 = vmatpush.bf16.msra.mxu0 0
    %1613 = vmatpush.bf16.msra.mxu0 0
    %1614 = vmatpush.bf16.msra.mxu0 0
    %1615 = vmatpush.bf16.msra.mxu0 0
    %1616 = vmatpush.bf16.msra.mxu0 %v1562
    %1617 = vmatmul.bf16.gmra.mxu0 %v1550
    %v1618 = vpop.f32.mrf.mxu0
    %v1619 = vadd.f32 0.0, %v1618
    %v1620 = vpop.f32.mrf.mxu0
    %1621 = vdwg.mxu0
    %1622 = vmatpush.bf16.msra.mxu0 0
    %1623 = vmatpush.bf16.msra.mxu0 0
    %1624 = vmatpush.bf16.msra.mxu0 0
    %1625 = vmatpush.bf16.msra.mxu0 0
    %1626 = vmatpush.bf16.msra.mxu0 0
    %1627 = vmatpush.bf16.msra.mxu0 0
    %1628 = vmatpush.bf16.msra.mxu0 0
    %1629 = vmatpush.bf16.msra.mxu0 %v1565
    %1630 = vmatmul.bf16.gmra.mxu0 %v1550
    %v1631 = vpop.f32.mrf.mxu0
    %v1632 = vadd.f32 0.0, %v1631
    %v1633 = vpop.f32.mrf.mxu0
    %1634 = vdwg.mxu0
    %1635 = vmatpush.bf16.msra.mxu0 0
    %1636 = vmatpush.bf16.msra.mxu0 0
    %1637 = vmatpush.bf16.msra.mxu0 0
    %1638 = vmatpush.bf16.msra.mxu0 0
    %1639 = vmatpush.bf16.msra.mxu0 0
    %1640 = vmatpush.bf16.msra.mxu0 0
    %1641 = vmatpush.bf16.msra.mxu0 0
    %1642 = vmatpush.bf16.msra.mxu0 %v1568
    %1643 = vmatmul.bf16.gmra.mxu0 %v1550
    %v1644 = vpop.f32.mrf.mxu0
    %v1645 = vadd.f32 0.0, %v1644
    %v1646 = vpop.f32.mrf.mxu0
    %1647 = vdwg.mxu0
    %1648 = vst [vmem:[#allocation1] ss:$4 sm:$0xff] %v1511
    %s1649 = scalar_lea.vmem [#allocation1], 32
    %1650 = vst [vmem:[%s1649] ss:$4 sm:$0xff] %v1512
    %v1651 = vld.sshfl [vmem:[#allocation1] sm:$0xff pattern:$0x73625140]
    %v1653 = vld.sshfl [vmem:[#allocation1 + $0x8] sm:$0xff pattern:$0x73625140]
    %v1655 = vld.sshfl [vmem:[#allocation1 + $0x10] sm:$0xff pattern:$0x73625140]
    %v1657 = vld.sshfl [vmem:[#allocation1 + $0x18] sm:$0xff pattern:$0x73625140]
    %v1659 = vld.sshfl [vmem:[#allocation1 + $0x20] sm:$0xff pattern:$0x73625140]
    %v1661 = vld.sshfl [vmem:[#allocation1 + $0x28] sm:$0xff pattern:$0x73625140]
    %1663 = vrot.lane.b32.xlu0 %v1651, 19
    %v1664 = vpop.permute.xlu0 %1663
    %1665 = vrot.lane.b32.xlu0 %v1653, 19
    %v1666 = vpop.permute.xlu0 %1665
    %1667 = vrot.lane.b32.xlu0 %v1655, 19
    %v1668 = vpop.permute.xlu0 %1667
    %1669 = vrot.lane.b32.xlu0 %v1657, 19
    %v1670 = vpop.permute.xlu0 %1669
    %1671 = vrot.lane.b32.xlu0 %v1659, 19
    %v1672 = vpop.permute.xlu0 %1671
    %1673 = vrot.lane.b32.xlu0 %v1661, 19
    %v1674 = vpop.permute.xlu0 %1673
    %v1675 = vsel %vm229, %v1664, %v1666
    %v1676 = vsel %vm229, %v1666, %v1668
    %v1677 = vsel %vm229, %v1668, %v1670
    %v1678 = vsel %vm229, %v1670, %v1672
    %v1679 = vsel %vm229, %v1672, %v1674
    %v1681 = vsel %vm110, %v1510, 0
    %v1684 = vsel %vm114, %v1675, 0
    %v1687 = vsel %vm114, %v1676, 0
    %v1690 = vsel %vm114, %v1677, 0
    %v1693 = vsel %vm114, %v1678, 0
    %v1696 = vsel %vm114, %v1679, 0
    %v1699 = vsel %vm114, %v1674, 0
    %1701 = vmatpush.bf16.msra.mxu0 0
    %1702 = vmatpush.bf16.msra.mxu0 0
    %1703 = vmatpush.bf16.msra.mxu0 0
    %1704 = vmatpush.bf16.msra.mxu0 0
    %1705 = vmatpush.bf16.msra.mxu0 0
    %1706 = vmatpush.bf16.msra.mxu0 0
    %1707 = vmatpush.bf16.msra.mxu0 0
    %1708 = vmatpush.bf16.msra.mxu0 %v1684
    %1709 = vmatmul.bf16.gmra.mxu0 %v1681
    %v1710 = vpop.f32.mrf.mxu0
    %v1711 = vadd.f32 %v1580, %v1710
    %v1712 = vpop.f32.mrf.mxu0
    %1713 = vdwg.mxu0
    %1714 = vmatpush.bf16.msra.mxu0 0
    %1715 = vmatpush.bf16.msra.mxu0 0
    %1716 = vmatpush.bf16.msra.mxu0 0
    %1717 = vmatpush.bf16.msra.mxu0 0
    %1718 = vmatpush.bf16.msra.mxu0 0
    %1719 = vmatpush.bf16.msra.mxu0 0
    %1720 = vmatpush.bf16.msra.mxu0 0
    %1721 = vmatpush.bf16.msra.mxu0 %v1687
    %1722 = vmatmul.bf16.gmra.mxu0 %v1681
    %v1723 = vpop.f32.mrf.mxu0
    %v1724 = vadd.f32 %v1593, %v1723
    %v1725 = vpop.f32.mrf.mxu0
    %1726 = vdwg.mxu0
    %1727 = vmatpush.bf16.msra.mxu0 0
    %1728 = vmatpush.bf16.msra.mxu0 0
    %1729 = vmatpush.bf16.msra.mxu0 0
    %1730 = vmatpush.bf16.msra.mxu0 0
    %1731 = vmatpush.bf16.msra.mxu0 0
    %1732 = vmatpush.bf16.msra.mxu0 0
    %1733 = vmatpush.bf16.msra.mxu0 0
    %1734 = vmatpush.bf16.msra.mxu0 %v1690
    %1735 = vmatmul.bf16.gmra.mxu0 %v1681
    %v1736 = vpop.f32.mrf.mxu0
    %v1737 = vadd.f32 %v1606, %v1736
    %v1738 = vpop.f32.mrf.mxu0
    %1739 = vdwg.mxu0
    %1740 = vmatpush.bf16.msra.mxu0 0
    %1741 = vmatpush.bf16.msra.mxu0 0
    %1742 = vmatpush.bf16.msra.mxu0 0
    %1743 = vmatpush.bf16.msra.mxu0 0
    %1744 = vmatpush.bf16.msra.mxu0 0
    %1745 = vmatpush.bf16.msra.mxu0 0
    %1746 = vmatpush.bf16.msra.mxu0 0
    %1747 = vmatpush.bf16.msra.mxu0 %v1693
    %1748 = vmatmul.bf16.gmra.mxu0 %v1681
    %v1749 = vpop.f32.mrf.mxu0
    %v1750 = vadd.f32 %v1619, %v1749
    %v1751 = vpop.f32.mrf.mxu0
    %1752 = vdwg.mxu0
    %1753 = vmatpush.bf16.msra.mxu0 0
    %1754 = vmatpush.bf16.msra.mxu0 0
    %1755 = vmatpush.bf16.msra.mxu0 0
    %1756 = vmatpush.bf16.msra.mxu0 0
    %1757 = vmatpush.bf16.msra.mxu0 0
    %1758 = vmatpush.bf16.msra.mxu0 0
    %1759 = vmatpush.bf16.msra.mxu0 0
    %1760 = vmatpush.bf16.msra.mxu0 %v1696
    %1761 = vmatmul.bf16.gmra.mxu0 %v1681
    %v1762 = vpop.f32.mrf.mxu0
    %v1763 = vadd.f32 %v1632, %v1762
    %v1764 = vpop.f32.mrf.mxu0
    %1765 = vdwg.mxu0
    %1766 = vmatpush.bf16.msra.mxu0 0
    %1767 = vmatpush.bf16.msra.mxu0 0
    %1768 = vmatpush.bf16.msra.mxu0 0
    %1769 = vmatpush.bf16.msra.mxu0 0
    %1770 = vmatpush.bf16.msra.mxu0 0
    %1771 = vmatpush.bf16.msra.mxu0 0
    %1772 = vmatpush.bf16.msra.mxu0 0
    %1773 = vmatpush.bf16.msra.mxu0 %v1699
    %1774 = vmatmul.bf16.gmra.mxu0 %v1681
    %v1775 = vpop.f32.mrf.mxu0
    %v1776 = vadd.f32 %v1645, %v1775
    %v1777 = vpop.f32.mrf.mxu0
    %1778 = vdwg.mxu0
    %s1779 = scalar_lea.vmem %s4, 4
    %v1780 = vld [vmem:[%s1779] sm:$0x3]
    %v1781 = vld [vmem:[#allocation2] sm:$0xff]
    %v1782 = vld [vmem:[#allocation2 + $0x8] sm:$0xf]
    %1784 = vst [vmem:[#allocation1] ss:$4 sm:$0xff] %v1781
    %s1786 = scalar_lea.vmem [#allocation1], 32
    %1787 = vst [vmem:[%s1786] ss:$4 sm:$0xff] %v1782
    %v1788 = vld.sshfl [vmem:[#allocation1] sm:$0xff pattern:$0x73625140]
    %v1790 = vld.sshfl [vmem:[#allocation1 + $0x8] sm:$0xff pattern:$0x73625140]
    %v1792 = vld.sshfl [vmem:[#allocation1 + $0x10] sm:$0xff pattern:$0x73625140]
    %v1794 = vld.sshfl [vmem:[#allocation1 + $0x18] sm:$0xff pattern:$0x73625140]
    %v1796 = vld.sshfl [vmem:[#allocation1 + $0x20] sm:$0xff pattern:$0x73625140]
    %v1798 = vld.sshfl [vmem:[#allocation1 + $0x28] sm:$0xff pattern:$0x73625140]
    %1800 = vrot.lane.b32.xlu0 %v1788, 17
    %v1801 = vpop.permute.xlu0 %1800
    %1802 = vrot.lane.b32.xlu0 %v1790, 17
    %v1803 = vpop.permute.xlu0 %1802
    %1804 = vrot.lane.b32.xlu0 %v1792, 17
    %v1805 = vpop.permute.xlu0 %1804
    %1806 = vrot.lane.b32.xlu0 %v1794, 17
    %v1807 = vpop.permute.xlu0 %1806
    %1808 = vrot.lane.b32.xlu0 %v1796, 17
    %v1809 = vpop.permute.xlu0 %1808
    %1810 = vrot.lane.b32.xlu0 %v1798, 17
    %v1811 = vpop.permute.xlu0 %1810
    %v1812 = vsel %vm383, %v1801, %v1803
    %v1813 = vsel %vm383, %v1803, %v1805
    %v1814 = vsel %vm383, %v1805, %v1807
    %v1815 = vsel %vm383, %v1807, %v1809
    %v1816 = vsel %vm383, %v1809, %v1811
    %v1818 = vsel %vm110, %v1780, 0
    %v1821 = vsel %vm114, %v1812, 0
    %v1824 = vsel %vm114, %v1813, 0
    %v1827 = vsel %vm114, %v1814, 0
    %v1830 = vsel %vm114, %v1815, 0
    %v1833 = vsel %vm114, %v1816, 0
    %v1836 = vsel %vm114, %v1811, 0
    %1838 = vmatpush.bf16.msra.mxu0 0
    %1839 = vmatpush.bf16.msra.mxu0 0
    %1840 = vmatpush.bf16.msra.mxu0 0
    %1841 = vmatpush.bf16.msra.mxu0 0
    %1842 = vmatpush.bf16.msra.mxu0 0
    %1843 = vmatpush.bf16.msra.mxu0 0
    %1844 = vmatpush.bf16.msra.mxu0 0
    %1845 = vmatpush.bf16.msra.mxu0 %v1821
    %1846 = vmatmul.bf16.gmra.mxu0 %v1818
    %v1847 = vpop.f32.mrf.mxu0
    %v1848 = vadd.f32 0.0, %v1847
    %v1849 = vpop.f32.mrf.mxu0
    %1850 = vdwg.mxu0
    %1851 = vmatpush.bf16.msra.mxu0 0
    %1852 = vmatpush.bf16.msra.mxu0 0
    %1853 = vmatpush.bf16.msra.mxu0 0
    %1854 = vmatpush.bf16.msra.mxu0 0
    %1855 = vmatpush.bf16.msra.mxu0 0
    %1856 = vmatpush.bf16.msra.mxu0 0
    %1857 = vmatpush.bf16.msra.mxu0 0
    %1858 = vmatpush.bf16.msra.mxu0 %v1824
    %1859 = vmatmul.bf16.gmra.mxu0 %v1818
    %v1860 = vpop.f32.mrf.mxu0
    %v1861 = vadd.f32 0.0, %v1860
    %v1862 = vpop.f32.mrf.mxu0
    %1863 = vdwg.mxu0
    %1864 = vmatpush.bf16.msra.mxu0 0
    %1865 = vmatpush.bf16.msra.mxu0 0
    %1866 = vmatpush.bf16.msra.mxu0 0
    %1867 = vmatpush.bf16.msra.mxu0 0
    %1868 = vmatpush.bf16.msra.mxu0 0
    %1869 = vmatpush.bf16.msra.mxu0 0
    %1870 = vmatpush.bf16.msra.mxu0 0
    %1871 = vmatpush.bf16.msra.mxu0 %v1827
    %1872 = vmatmul.bf16.gmra.mxu0 %v1818
    %v1873 = vpop.f32.mrf.mxu0
    %v1874 = vadd.f32 0.0, %v1873
    %v1875 = vpop.f32.mrf.mxu0
    %1876 = vdwg.mxu0
    %1877 = vmatpush.bf16.msra.mxu0 0
    %1878 = vmatpush.bf16.msra.mxu0 0
    %1879 = vmatpush.bf16.msra.mxu0 0
    %1880 = vmatpush.bf16.msra.mxu0 0
    %1881 = vmatpush.bf16.msra.mxu0 0
    %1882 = vmatpush.bf16.msra.mxu0 0
    %1883 = vmatpush.bf16.msra.mxu0 0
    %1884 = vmatpush.bf16.msra.mxu0 %v1830
    %1885 = vmatmul.bf16.gmra.mxu0 %v1818
    %v1886 = vpop.f32.mrf.mxu0
    %v1887 = vadd.f32 0.0, %v1886
    %v1888 = vpop.f32.mrf.mxu0
    %1889 = vdwg.mxu0
    %1890 = vmatpush.bf16.msra.mxu0 0
    %1891 = vmatpush.bf16.msra.mxu0 0
    %1892 = vmatpush.bf16.msra.mxu0 0
    %1893 = vmatpush.bf16.msra.mxu0 0
    %1894 = vmatpush.bf16.msra.mxu0 0
    %1895 = vmatpush.bf16.msra.mxu0 0
    %1896 = vmatpush.bf16.msra.mxu0 0
    %1897 = vmatpush.bf16.msra.mxu0 %v1833
    %1898 = vmatmul.bf16.gmra.mxu0 %v1818
    %v1899 = vpop.f32.mrf.mxu0
    %v1900 = vadd.f32 0.0, %v1899
    %v1901 = vpop.f32.mrf.mxu0
    %1902 = vdwg.mxu0
    %1903 = vmatpush.bf16.msra.mxu0 0
    %1904 = vmatpush.bf16.msra.mxu0 0
    %1905 = vmatpush.bf16.msra.mxu0 0
    %1906 = vmatpush.bf16.msra.mxu0 0
    %1907 = vmatpush.bf16.msra.mxu0 0
    %1908 = vmatpush.bf16.msra.mxu0 0
    %1909 = vmatpush.bf16.msra.mxu0 0
    %1910 = vmatpush.bf16.msra.mxu0 %v1836
    %1911 = vmatmul.bf16.gmra.mxu0 %v1818
    %v1912 = vpop.f32.mrf.mxu0
    %v1913 = vadd.f32 0.0, %v1912
    %v1914 = vpop.f32.mrf.mxu0
    %1915 = vdwg.mxu0
    %v1916 = vadd.f32 %v1711, %v1848
    %v1917 = vadd.f32 %v1724, %v1861
    %v1918 = vadd.f32 %v1737, %v1874
    %v1919 = vadd.f32 %v1750, %v1887
    %v1920 = vadd.f32 %v1763, %v1900
    %v1921 = vadd.f32 %v1776, %v1913
    %s1922 = scalar_lea.vmem %s4, 6
    %v1923 = vld [vmem:[%s1922] sm:$0x3]
    %v1924 = vld [vmem:[#allocation2] sm:$0xff]
    %v1925 = vld [vmem:[#allocation2 + $0x8] sm:$0x3f]
    %1927 = vst [vmem:[#allocation1] ss:$4 sm:$0xff] %v1924
    %s1929 = scalar_lea.vmem [#allocation1], 32
    %1930 = vst [vmem:[%s1929] ss:$4 sm:$0xff] %v1925
    %v1931 = vld.sshfl [vmem:[#allocation1] sm:$0xff pattern:$0x73625140]
    %v1933 = vld.sshfl [vmem:[#allocation1 + $0x8] sm:$0xff pattern:$0x73625140]
    %v1935 = vld.sshfl [vmem:[#allocation1 + $0x10] sm:$0xff pattern:$0x73625140]
    %v1937 = vld.sshfl [vmem:[#allocation1 + $0x18] sm:$0xff pattern:$0x73625140]
    %v1939 = vld.sshfl [vmem:[#allocation1 + $0x20] sm:$0xff pattern:$0x73625140]
    %v1941 = vld.sshfl [vmem:[#allocation1 + $0x28] sm:$0xff pattern:$0x73625140]
    %v1943 = vld.sshfl [vmem:[#allocation1 + $0x30] sm:$0xff pattern:$0x73625140]
    %1945 = vrot.lane.b32.xlu0 %v1931, 1
    %v1946 = vpop.permute.xlu0 %1945
    %1947 = vrot.lane.b32.xlu0 %v1933, 1
    %v1948 = vpop.permute.xlu0 %1947
    %1949 = vrot.lane.b32.xlu0 %v1935, 1
    %v1950 = vpop.permute.xlu0 %1949
    %1951 = vrot.lane.b32.xlu0 %v1937, 1
    %v1952 = vpop.permute.xlu0 %1951
    %1953 = vrot.lane.b32.xlu0 %v1939, 1
    %v1954 = vpop.permute.xlu0 %1953
    %1955 = vrot.lane.b32.xlu0 %v1941, 1
    %v1956 = vpop.permute.xlu0 %1955
    %1957 = vrot.lane.b32.xlu0 %v1943, 1
    %v1958 = vpop.permute.xlu0 %1957
    %v1959 = vsel %vm553, %v1946, %v1948
    %v1960 = vsel %vm553, %v1948, %v1950
    %v1961 = vsel %vm553, %v1950, %v1952
    %v1962 = vsel %vm553, %v1952, %v1954
    %v1963 = vsel %vm553, %v1954, %v1956
    %v1964 = vsel %vm553, %v1956, %v1958
    %v1966 = vsel %vm110, %v1923, 0
    %v1969 = vsel %vm114, %v1959, 0
    %v1972 = vsel %vm114, %v1960, 0
    %v1975 = vsel %vm114, %v1961, 0
    %v1978 = vsel %vm114, %v1962, 0
    %v1981 = vsel %vm114, %v1963, 0
    %v1984 = vsel %vm114, %v1964, 0
    %1986 = vmatpush.bf16.msra.mxu0 0
    %1987 = vmatpush.bf16.msra.mxu0 0
    %1988 = vmatpush.bf16.msra.mxu0 0
    %1989 = vmatpush.bf16.msra.mxu0 0
    %1990 = vmatpush.bf16.msra.mxu0 0
    %1991 = vmatpush.bf16.msra.mxu0 0
    %1992 = vmatpush.bf16.msra.mxu0 0
    %1993 = vmatpush.bf16.msra.mxu0 %v1969
    %1994 = vmatmul.bf16.gmra.mxu0 %v1966
    %v1995 = vpop.f32.mrf.mxu0
    %v1996 = vadd.f32 0.0, %v1995
    %v1997 = vpop.f32.mrf.mxu0
    %1998 = vdwg.mxu0
    %1999 = vmatpush.bf16.msra.mxu0 0
    %2000 = vmatpush.bf16.msra.mxu0 0
    %2001 = vmatpush.bf16.msra.mxu0 0
    %2002 = vmatpush.bf16.msra.mxu0 0
    %2003 = vmatpush.bf16.msra.mxu0 0
    %2004 = vmatpush.bf16.msra.mxu0 0
    %2005 = vmatpush.bf16.msra.mxu0 0
    %2006 = vmatpush.bf16.msra.mxu0 %v1972
    %2007 = vmatmul.bf16.gmra.mxu0 %v1966
    %v2008 = vpop.f32.mrf.mxu0
    %v2009 = vadd.f32 0.0, %v2008
    %v2010 = vpop.f32.mrf.mxu0
    %2011 = vdwg.mxu0
    %2012 = vmatpush.bf16.msra.mxu0 0
    %2013 = vmatpush.bf16.msra.mxu0 0
    %2014 = vmatpush.bf16.msra.mxu0 0
    %2015 = vmatpush.bf16.msra.mxu0 0
    %2016 = vmatpush.bf16.msra.mxu0 0
    %2017 = vmatpush.bf16.msra.mxu0 0
    %2018 = vmatpush.bf16.msra.mxu0 0
    %2019 = vmatpush.bf16.msra.mxu0 %v1975
    %2020 = vmatmul.bf16.gmra.mxu0 %v1966
    %v2021 = vpop.f32.mrf.mxu0
    %v2022 = vadd.f32 0.0, %v2021
    %v2023 = vpop.f32.mrf.mxu0
    %2024 = vdwg.mxu0
    %2025 = vmatpush.bf16.msra.mxu0 0
    %2026 = vmatpush.bf16.msra.mxu0 0
    %2027 = vmatpush.bf16.msra.mxu0 0
    %2028 = vmatpush.bf16.msra.mxu0 0
    %2029 = vmatpush.bf16.msra.mxu0 0
    %2030 = vmatpush.bf16.msra.mxu0 0
    %2031 = vmatpush.bf16.msra.mxu0 0
    %2032 = vmatpush.bf16.msra.mxu0 %v1978
    %2033 = vmatmul.bf16.gmra.mxu0 %v1966
    %v2034 = vpop.f32.mrf.mxu0
    %v2035 = vadd.f32 0.0, %v2034
    %v2036 = vpop.f32.mrf.mxu0
    %2037 = vdwg.mxu0
    %2038 = vmatpush.bf16.msra.mxu0 0
    %2039 = vmatpush.bf16.msra.mxu0 0
    %2040 = vmatpush.bf16.msra.mxu0 0
    %2041 = vmatpush.bf16.msra.mxu0 0
    %2042 = vmatpush.bf16.msra.mxu0 0
    %2043 = vmatpush.bf16.msra.mxu0 0
    %2044 = vmatpush.bf16.msra.mxu0 0
    %2045 = vmatpush.bf16.msra.mxu0 %v1981
    %2046 = vmatmul.bf16.gmra.mxu0 %v1966
    %v2047 = vpop.f32.mrf.mxu0
    %v2048 = vadd.f32 0.0, %v2047
    %v2049 = vpop.f32.mrf.mxu0
    %2050 = vdwg.mxu0
    %2051 = vmatpush.bf16.msra.mxu0 0
    %2052 = vmatpush.bf16.msra.mxu0 0
    %2053 = vmatpush.bf16.msra.mxu0 0
    %2054 = vmatpush.bf16.msra.mxu0 0
    %2055 = vmatpush.bf16.msra.mxu0 0
    %2056 = vmatpush.bf16.msra.mxu0 0
    %2057 = vmatpush.bf16.msra.mxu0 0
    %2058 = vmatpush.bf16.msra.mxu0 %v1984
    %2059 = vmatmul.bf16.gmra.mxu0 %v1966
    %v2060 = vpop.f32.mrf.mxu0
    %v2061 = vadd.f32 0.0, %v2060
    %v2062 = vpop.f32.mrf.mxu0
    %2063 = vdwg.mxu0
    %v2064 = vadd.f32 %v1916, %v1996
    %v2065 = vadd.f32 %v1917, %v2009
    %v2066 = vadd.f32 %v1918, %v2022
    %v2067 = vadd.f32 %v1919, %v2035
    %v2068 = vadd.f32 %v1920, %v2048
    %v2069 = vadd.f32 %v1921, %v2061
    %s2070 = scalar_lea.vmem %s4, 8
    %v2071 = vld [vmem:[%s2070] sm:$0x3]
    %v2072 = vld [vmem:[#allocation2 + $0x2] sm:$0xff]
    %v2073 = vld [vmem:[#allocation2 + $0xa] sm:$0xf]
    %2075 = vst [vmem:[#allocation1] ss:$4 sm:$0xff] %v2072
    %s2077 = scalar_lea.vmem [#allocation1], 32
    %2078 = vst [vmem:[%s2077] ss:$4 sm:$0xff] %v2073
    %v2079 = vld.sshfl [vmem:[#allocation1] sm:$0xff pattern:$0x73625140]
    %v2080 = vld.sshfl [vmem:[#allocation1 + $0x8] sm:$0xff pattern:$0x73625140]
    %v2081 = vld.sshfl [vmem:[#allocation1 + $0x10] sm:$0xff pattern:$0x73625140]
    %v2082 = vld.sshfl [vmem:[#allocation1 + $0x18] sm:$0xff pattern:$0x73625140]
    %v2083 = vld.sshfl [vmem:[#allocation1 + $0x20] sm:$0xff pattern:$0x73625140]
    %v2084 = vld.sshfl [vmem:[#allocation1 + $0x28] sm:$0xff pattern:$0x73625140]
    %v2086 = vsel %vm110, %v2071, 0
    %v2088 = vsel %vm114, %v2079, 0
    %v2090 = vsel %vm114, %v2080, 0
    %v2092 = vsel %vm114, %v2081, 0
    %v2094 = vsel %vm114, %v2082, 0
    %v2096 = vsel %vm114, %v2083, 0
    %v2098 = vsel %vm114, %v2084, 0
    %2100 = vmatpush.bf16.msra.mxu0 0
    %2101 = vmatpush.bf16.msra.mxu0 0
    %2102 = vmatpush.bf16.msra.mxu0 0
    %2103 = vmatpush.bf16.msra.mxu0 0
    %2104 = vmatpush.bf16.msra.mxu0 0
    %2105 = vmatpush.bf16.msra.mxu0 0
    %2106 = vmatpush.bf16.msra.mxu0 0
    %2107 = vmatpush.bf16.msra.mxu0 %v2088
    %2108 = vmatmul.bf16.gmra.mxu0 %v2086
    %v2109 = vpop.f32.mrf.mxu0
    %v2110 = vadd.f32 0.0, %v2109
    %v2111 = vpop.f32.mrf.mxu0
    %2112 = vdwg.mxu0
    %2113 = vmatpush.bf16.msra.mxu0 0
    %2114 = vmatpush.bf16.msra.mxu0 0
    %2115 = vmatpush.bf16.msra.mxu0 0
    %2116 = vmatpush.bf16.msra.mxu0 0
    %2117 = vmatpush.bf16.msra.mxu0 0
    %2118 = vmatpush.bf16.msra.mxu0 0
    %2119 = vmatpush.bf16.msra.mxu0 0
    %2120 = vmatpush.bf16.msra.mxu0 %v2090
    %2121 = vmatmul.bf16.gmra.mxu0 %v2086
    %v2122 = vpop.f32.mrf.mxu0
    %v2123 = vadd.f32 0.0, %v2122
    %v2124 = vpop.f32.mrf.mxu0
    %2125 = vdwg.mxu0
    %2126 = vmatpush.bf16.msra.mxu0 0
    %2127 = vmatpush.bf16.msra.mxu0 0
    %2128 = vmatpush.bf16.msra.mxu0 0
    %2129 = vmatpush.bf16.msra.mxu0 0
    %2130 = vmatpush.bf16.msra.mxu0 0
    %2131 = vmatpush.bf16.msra.mxu0 0
    %2132 = vmatpush.bf16.msra.mxu0 0
    %2133 = vmatpush.bf16.msra.mxu0 %v2092
    %2134 = vmatmul.bf16.gmra.mxu0 %v2086
    %v2135 = vpop.f32.mrf.mxu0
    %v2136 = vadd.f32 0.0, %v2135
    %v2137 = vpop.f32.mrf.mxu0
    %2138 = vdwg.mxu0
    %2139 = vmatpush.bf16.msra.mxu0 0
    %2140 = vmatpush.bf16.msra.mxu0 0
    %2141 = vmatpush.bf16.msra.mxu0 0
    %2142 = vmatpush.bf16.msra.mxu0 0
    %2143 = vmatpush.bf16.msra.mxu0 0
    %2144 = vmatpush.bf16.msra.mxu0 0
    %2145 = vmatpush.bf16.msra.mxu0 0
    %2146 = vmatpush.bf16.msra.mxu0 %v2094
    %2147 = vmatmul.bf16.gmra.mxu0 %v2086
    %v2148 = vpop.f32.mrf.mxu0
    %v2149 = vadd.f32 0.0, %v2148
    %v2150 = vpop.f32.mrf.mxu0
    %2151 = vdwg.mxu0
    %2152 = vmatpush.bf16.msra.mxu0 0
    %2153 = vmatpush.bf16.msra.mxu0 0
    %2154 = vmatpush.bf16.msra.mxu0 0
    %2155 = vmatpush.bf16.msra.mxu0 0
    %2156 = vmatpush.bf16.msra.mxu0 0
    %2157 = vmatpush.bf16.msra.mxu0 0
    %2158 = vmatpush.bf16.msra.mxu0 0
    %2159 = vmatpush.bf16.msra.mxu0 %v2096
    %2160 = vmatmul.bf16.gmra.mxu0 %v2086
    %v2161 = vpop.f32.mrf.mxu0
    %v2162 = vadd.f32 0.0, %v2161
    %v2163 = vpop.f32.mrf.mxu0
    %2164 = vdwg.mxu0
    %2165 = vmatpush.bf16.msra.mxu0 0
    %2166 = vmatpush.bf16.msra.mxu0 0
    %2167 = vmatpush.bf16.msra.mxu0 0
    %2168 = vmatpush.bf16.msra.mxu0 0
    %2169 = vmatpush.bf16.msra.mxu0 0
    %2170 = vmatpush.bf16.msra.mxu0 0
    %2171 = vmatpush.bf16.msra.mxu0 0
    %2172 = vmatpush.bf16.msra.mxu0 %v2098
    %2173 = vmatmul.bf16.gmra.mxu0 %v2086
    %v2174 = vpop.f32.mrf.mxu0
    %v2175 = vadd.f32 0.0, %v2174
    %v2176 = vpop.f32.mrf.mxu0
    %2177 = vdwg.mxu0
    %v2178 = vadd.f32 %v2064, %v2110
    %v2179 = vadd.f32 %v2065, %v2123
    %v2180 = vadd.f32 %v2066, %v2136
    %v2181 = vadd.f32 %v2067, %v2149
    %v2182 = vadd.f32 %v2068, %v2162
    %v2183 = vadd.f32 %v2069, %v2175
    %s2184 = scalar_lea.vmem %s4, 10
    %v2185 = vld [vmem:[%s2184] sm:$0x3]
    %v2186 = vld [vmem:[#allocation2 + $0x2] sm:$0xff]
    %v2187 = vld [vmem:[#allocation2 + $0xa] sm:$0xf]
    %2189 = vst [vmem:[#allocation1] ss:$4 sm:$0xff] %v2186
    %s2191 = scalar_lea.vmem [#allocation1], 32
    %2192 = vst [vmem:[%s2191] ss:$4 sm:$0xff] %v2187
    %v2193 = vld.sshfl [vmem:[#allocation1] sm:$0xff pattern:$0x73625140]
    %v2195 = vld.sshfl [vmem:[#allocation1 + $0x8] sm:$0xff pattern:$0x73625140]
    %v2197 = vld.sshfl [vmem:[#allocation1 + $0x10] sm:$0xff pattern:$0x73625140]
    %v2199 = vld.sshfl [vmem:[#allocation1 + $0x18] sm:$0xff pattern:$0x73625140]
    %v2201 = vld.sshfl [vmem:[#allocation1 + $0x20] sm:$0xff pattern:$0x73625140]
    %v2203 = vld.sshfl [vmem:[#allocation1 + $0x28] sm:$0xff pattern:$0x73625140]
    %2205 = vrot.lane.b32.xlu0 %v2193, 127
    %v2206 = vpop.permute.xlu0 %2205
    %2207 = vrot.lane.b32.xlu0 %v2195, 127
    %v2208 = vpop.permute.xlu0 %2207
    %2209 = vrot.lane.b32.xlu0 %v2197, 127
    %v2210 = vpop.permute.xlu0 %2209
    %2211 = vrot.lane.b32.xlu0 %v2199, 127
    %v2212 = vpop.permute.xlu0 %2211
    %2213 = vrot.lane.b32.xlu0 %v2201, 127
    %v2214 = vpop.permute.xlu0 %2213
    %2215 = vrot.lane.b32.xlu0 %v2203, 127
    %v2216 = vpop.permute.xlu0 %2215
    %v2217 = vsel %vm850, %v2206, %v2208
    %v2218 = vsel %vm850, %v2208, %v2210
    %v2219 = vsel %vm850, %v2210, %v2212
    %v2220 = vsel %vm850, %v2212, %v2214
    %v2221 = vsel %vm850, %v2214, %v2216
    %v2223 = vsel %vm110, %v2185, 0
    %v2226 = vsel %vm114, %v2217, 0
    %v2229 = vsel %vm114, %v2218, 0
    %v2232 = vsel %vm114, %v2219, 0
    %v2235 = vsel %vm114, %v2220, 0
    %v2238 = vsel %vm114, %v2221, 0
    %v2241 = vsel %vm114, %v2216, 0
    %2243 = vmatpush.bf16.msra.mxu0 0
    %2244 = vmatpush.bf16.msra.mxu0 0
    %2245 = vmatpush.bf16.msra.mxu0 0
    %2246 = vmatpush.bf16.msra.mxu0 0
    %2247 = vmatpush.bf16.msra.mxu0 0
    %2248 = vmatpush.bf16.msra.mxu0 0
    %2249 = vmatpush.bf16.msra.mxu0 0
    %2250 = vmatpush.bf16.msra.mxu0 %v2226
    %2251 = vmatmul.bf16.gmra.mxu0 %v2223
    %v2252 = vpop.f32.mrf.mxu0
    %v2253 = vadd.f32 0.0, %v2252
    %v2254 = vpop.f32.mrf.mxu0
    %2255 = vdwg.mxu0
    %2256 = vmatpush.bf16.msra.mxu0 0
    %2257 = vmatpush.bf16.msra.mxu0 0
    %2258 = vmatpush.bf16.msra.mxu0 0
    %2259 = vmatpush.bf16.msra.mxu0 0
    %2260 = vmatpush.bf16.msra.mxu0 0
    %2261 = vmatpush.bf16.msra.mxu0 0
    %2262 = vmatpush.bf16.msra.mxu0 0
    %2263 = vmatpush.bf16.msra.mxu0 %v2229
    %2264 = vmatmul.bf16.gmra.mxu0 %v2223
    %v2265 = vpop.f32.mrf.mxu0
    %v2266 = vadd.f32 0.0, %v2265
    %v2267 = vpop.f32.mrf.mxu0
    %2268 = vdwg.mxu0
    %2269 = vmatpush.bf16.msra.mxu0 0
    %2270 = vmatpush.bf16.msra.mxu0 0
    %2271 = vmatpush.bf16.msra.mxu0 0
    %2272 = vmatpush.bf16.msra.mxu0 0
    %2273 = vmatpush.bf16.msra.mxu0 0
    %2274 = vmatpush.bf16.msra.mxu0 0
    %2275 = vmatpush.bf16.msra.mxu0 0
    %2276 = vmatpush.bf16.msra.mxu0 %v2232
    %2277 = vmatmul.bf16.gmra.mxu0 %v2223
    %v2278 = vpop.f32.mrf.mxu0
    %v2279 = vadd.f32 0.0, %v2278
    %v2280 = vpop.f32.mrf.mxu0
    %2281 = vdwg.mxu0
    %2282 = vmatpush.bf16.msra.mxu0 0
    %2283 = vmatpush.bf16.msra.mxu0 0
    %2284 = vmatpush.bf16.msra.mxu0 0
    %2285 = vmatpush.bf16.msra.mxu0 0
    %2286 = vmatpush.bf16.msra.mxu0 0
    %2287 = vmatpush.bf16.msra.mxu0 0
    %2288 = vmatpush.bf16.msra.mxu0 0
    %2289 = vmatpush.bf16.msra.mxu0 %v2235
    %2290 = vmatmul.bf16.gmra.mxu0 %v2223
    %v2291 = vpop.f32.mrf.mxu0
    %v2292 = vadd.f32 0.0, %v2291
    %v2293 = vpop.f32.mrf.mxu0
    %2294 = vdwg.mxu0
    %2295 = vmatpush.bf16.msra.mxu0 0
    %2296 = vmatpush.bf16.msra.mxu0 0
    %2297 = vmatpush.bf16.msra.mxu0 0
    %2298 = vmatpush.bf16.msra.mxu0 0
    %2299 = vmatpush.bf16.msra.mxu0 0
    %2300 = vmatpush.bf16.msra.mxu0 0
    %2301 = vmatpush.bf16.msra.mxu0 0
    %2302 = vmatpush.bf16.msra.mxu0 %v2238
    %2303 = vmatmul.bf16.gmra.mxu0 %v2223
    %v2304 = vpop.f32.mrf.mxu0
    %v2305 = vadd.f32 0.0, %v2304
    %v2306 = vpop.f32.mrf.mxu0
    %2307 = vdwg.mxu0
    %2308 = vmatpush.bf16.msra.mxu0 0
    %2309 = vmatpush.bf16.msra.mxu0 0
    %2310 = vmatpush.bf16.msra.mxu0 0
    %2311 = vmatpush.bf16.msra.mxu0 0
    %2312 = vmatpush.bf16.msra.mxu0 0
    %2313 = vmatpush.bf16.msra.mxu0 0
    %2314 = vmatpush.bf16.msra.mxu0 0
    %2315 = vmatpush.bf16.msra.mxu0 %v2241
    %2316 = vmatmul.bf16.gmra.mxu0 %v2223
    %v2317 = vpop.f32.mrf.mxu0
    %v2318 = vadd.f32 0.0, %v2317
    %v2319 = vpop.f32.mrf.mxu0
    %2320 = vdwg.mxu0
    %v2321 = vadd.f32 %v2178, %v2253
    %v2322 = vadd.f32 %v2179, %v2266
    %v2323 = vadd.f32 %v2180, %v2279
    %v2324 = vadd.f32 %v2181, %v2292
    %v2325 = vadd.f32 %v2182, %v2305
    %v2326 = vadd.f32 %v2183, %v2318
    %s2327 = scalar_lea.vmem %s4, 12
    %v2328 = vld [vmem:[%s2327] sm:$0x3]
    %v2329 = vld [vmem:[#allocation2 + $0x2] sm:$0xff]
    %v2330 = vld [vmem:[#allocation2 + $0xa] sm:$0xf]
    %2332 = vst [vmem:[#allocation1] ss:$4 sm:$0xff] %v2329
    %s2334 = scalar_lea.vmem [#allocation1], 32
    %2335 = vst [vmem:[%s2334] ss:$4 sm:$0xff] %v2330
    %v2336 = vld.sshfl [vmem:[#allocation1] sm:$0xff pattern:$0x73625140]
    %v2338 = vld.sshfl [vmem:[#allocation1 + $0x8] sm:$0xff pattern:$0x73625140]
    %v2340 = vld.sshfl [vmem:[#allocation1 + $0x10] sm:$0xff pattern:$0x73625140]
    %v2342 = vld.sshfl [vmem:[#allocation1 + $0x18] sm:$0xff pattern:$0x73625140]
    %v2344 = vld.sshfl [vmem:[#allocation1 + $0x20] sm:$0xff pattern:$0x73625140]
    %v2346 = vld.sshfl [vmem:[#allocation1 + $0x28] sm:$0xff pattern:$0x73625140]
    %2348 = vrot.lane.b32.xlu0 %v2336, 111
    %v2349 = vpop.permute.xlu0 %2348
    %2350 = vrot.lane.b32.xlu0 %v2338, 111
    %v2351 = vpop.permute.xlu0 %2350
    %2352 = vrot.lane.b32.xlu0 %v2340, 111
    %v2353 = vpop.permute.xlu0 %2352
    %2354 = vrot.lane.b32.xlu0 %v2342, 111
    %v2355 = vpop.permute.xlu0 %2354
    %2356 = vrot.lane.b32.xlu0 %v2344, 111
    %v2357 = vpop.permute.xlu0 %2356
    %2358 = vrot.lane.b32.xlu0 %v2346, 111
    %v2359 = vpop.permute.xlu0 %2358
    %v2360 = vsel %vm1010, %v2349, %v2351
    %v2361 = vsel %vm1010, %v2351, %v2353
    %v2362 = vsel %vm1010, %v2353, %v2355
    %v2363 = vsel %vm1010, %v2355, %v2357
    %v2364 = vsel %vm1010, %v2357, %v2359
    %v2366 = vsel %vm110, %v2328, 0
    %v2369 = vsel %vm114, %v2360, 0
    %v2372 = vsel %vm114, %v2361, 0
    %v2375 = vsel %vm114, %v2362, 0
    %v2378 = vsel %vm114, %v2363, 0
    %v2381 = vsel %vm114, %v2364, 0
    %v2384 = vsel %vm114, %v2359, 0
    %2386 = vmatpush.bf16.msra.mxu0 0
    %2387 = vmatpush.bf16.msra.mxu0 0
    %2388 = vmatpush.bf16.msra.mxu0 0
    %2389 = vmatpush.bf16.msra.mxu0 0
    %2390 = vmatpush.bf16.msra.mxu0 0
    %2391 = vmatpush.bf16.msra.mxu0 0
    %2392 = vmatpush.bf16.msra.mxu0 0
    %2393 = vmatpush.bf16.msra.mxu0 %v2369
    %2394 = vmatmul.bf16.gmra.mxu0 %v2366
    %v2395 = vpop.f32.mrf.mxu0
    %v2396 = vadd.f32 0.0, %v2395
    %v2397 = vpop.f32.mrf.mxu0
    %2398 = vdwg.mxu0
    %2399 = vmatpush.bf16.msra.mxu0 0
    %2400 = vmatpush.bf16.msra.mxu0 0
    %2401 = vmatpush.bf16.msra.mxu0 0
    %2402 = vmatpush.bf16.msra.mxu0 0
    %2403 = vmatpush.bf16.msra.mxu0 0
    %2404 = vmatpush.bf16.msra.mxu0 0
    %2405 = vmatpush.bf16.msra.mxu0 0
    %2406 = vmatpush.bf16.msra.mxu0 %v2372
    %2407 = vmatmul.bf16.gmra.mxu0 %v2366
    %v2408 = vpop.f32.mrf.mxu0
    %v2409 = vadd.f32 0.0, %v2408
    %v2410 = vpop.f32.mrf.mxu0
    %2411 = vdwg.mxu0
    %2412 = vmatpush.bf16.msra.mxu0 0
    %2413 = vmatpush.bf16.msra.mxu0 0
    %2414 = vmatpush.bf16.msra.mxu0 0
    %2415 = vmatpush.bf16.msra.mxu0 0
    %2416 = vmatpush.bf16.msra.mxu0 0
    %2417 = vmatpush.bf16.msra.mxu0 0
    %2418 = vmatpush.bf16.msra.mxu0 0
    %2419 = vmatpush.bf16.msra.mxu0 %v2375
    %2420 = vmatmul.bf16.gmra.mxu0 %v2366
    %v2421 = vpop.f32.mrf.mxu0
    %v2422 = vadd.f32 0.0, %v2421
    %v2423 = vpop.f32.mrf.mxu0
    %2424 = vdwg.mxu0
    %2425 = vmatpush.bf16.msra.mxu0 0
    %2426 = vmatpush.bf16.msra.mxu0 0
    %2427 = vmatpush.bf16.msra.mxu0 0
    %2428 = vmatpush.bf16.msra.mxu0 0
    %2429 = vmatpush.bf16.msra.mxu0 0
    %2430 = vmatpush.bf16.msra.mxu0 0
    %2431 = vmatpush.bf16.msra.mxu0 0
    %2432 = vmatpush.bf16.msra.mxu0 %v2378
    %2433 = vmatmul.bf16.gmra.mxu0 %v2366
    %v2434 = vpop.f32.mrf.mxu0
    %v2435 = vadd.f32 0.0, %v2434
    %v2436 = vpop.f32.mrf.mxu0
    %2437 = vdwg.mxu0
    %2438 = vmatpush.bf16.msra.mxu0 0
    %2439 = vmatpush.bf16.msra.mxu0 0
    %2440 = vmatpush.bf16.msra.mxu0 0
    %2441 = vmatpush.bf16.msra.mxu0 0
    %2442 = vmatpush.bf16.msra.mxu0 0
    %2443 = vmatpush.bf16.msra.mxu0 0
    %2444 = vmatpush.bf16.msra.mxu0 0
    %2445 = vmatpush.bf16.msra.mxu0 %v2381
    %2446 = vmatmul.bf16.gmra.mxu0 %v2366
    %v2447 = vpop.f32.mrf.mxu0
    %v2448 = vadd.f32 0.0, %v2447
    %v2449 = vpop.f32.mrf.mxu0
    %2450 = vdwg.mxu0
    %2451 = vmatpush.bf16.msra.mxu0 0
    %2452 = vmatpush.bf16.msra.mxu0 0
    %2453 = vmatpush.bf16.msra.mxu0 0
    %2454 = vmatpush.bf16.msra.mxu0 0
    %2455 = vmatpush.bf16.msra.mxu0 0
    %2456 = vmatpush.bf16.msra.mxu0 0
    %2457 = vmatpush.bf16.msra.mxu0 0
    %2458 = vmatpush.bf16.msra.mxu0 %v2384
    %2459 = vmatmul.bf16.gmra.mxu0 %v2366
    %v2460 = vpop.f32.mrf.mxu0
    %v2461 = vadd.f32 0.0, %v2460
    %v2462 = vpop.f32.mrf.mxu0
    %2463 = vdwg.mxu0
    %v2464 = vadd.f32 %v2321, %v2396
    %v2465 = vadd.f32 %v2322, %v2409
    %v2466 = vadd.f32 %v2323, %v2422
    %v2467 = vadd.f32 %v2324, %v2435
    %v2468 = vadd.f32 %v2325, %v2448
    %v2469 = vadd.f32 %v2326, %v2461
    %s2470 = scalar_lea.vmem %s4, 14
    %v2471 = vld [vmem:[%s2470] sm:$0x3]
    %v2472 = vld [vmem:[#allocation2 + $0x2] sm:$0xff]
    %v2473 = vld [vmem:[#allocation2 + $0xa] sm:$0xf]
    %2475 = vst [vmem:[#allocation1] ss:$4 sm:$0xff] %v2472
    %s2477 = scalar_lea.vmem [#allocation1], 32
    %2478 = vst [vmem:[%s2477] ss:$4 sm:$0xff] %v2473
    %v2479 = vld.sshfl [vmem:[#allocation1] sm:$0xff pattern:$0x73625140]
    %v2481 = vld.sshfl [vmem:[#allocation1 + $0x8] sm:$0xff pattern:$0x73625140]
    %v2483 = vld.sshfl [vmem:[#allocation1 + $0x10] sm:$0xff pattern:$0x73625140]
    %v2485 = vld.sshfl [vmem:[#allocation1 + $0x18] sm:$0xff pattern:$0x73625140]
    %v2487 = vld.sshfl [vmem:[#allocation1 + $0x20] sm:$0xff pattern:$0x73625140]
    %v2489 = vld.sshfl [vmem:[#allocation1 + $0x28] sm:$0xff pattern:$0x73625140]
    %2491 = vrot.lane.b32.xlu0 %v2479, 110
    %v2492 = vpop.permute.xlu0 %2491
    %2493 = vrot.lane.b32.xlu0 %v2481, 110
    %v2494 = vpop.permute.xlu0 %2493
    %2495 = vrot.lane.b32.xlu0 %v2483, 110
    %v2496 = vpop.permute.xlu0 %2495
    %2497 = vrot.lane.b32.xlu0 %v2485, 110
    %v2498 = vpop.permute.xlu0 %2497
    %2499 = vrot.lane.b32.xlu0 %v2487, 110
    %v2500 = vpop.permute.xlu0 %2499
    %2501 = vrot.lane.b32.xlu0 %v2489, 110
    %v2502 = vpop.permute.xlu0 %2501
    %v2503 = vsel %vm1170, %v2492, %v2494
    %v2504 = vsel %vm1170, %v2494, %v2496
    %v2505 = vsel %vm1170, %v2496, %v2498
    %v2506 = vsel %vm1170, %v2498, %v2500
    %v2507 = vsel %vm1170, %v2500, %v2502
    %v2509 = vsel %vm110, %v2471, 0
    %v2512 = vsel %vm114, %v2503, 0
    %v2515 = vsel %vm114, %v2504, 0
    %v2518 = vsel %vm114, %v2505, 0
    %v2521 = vsel %vm114, %v2506, 0
    %v2524 = vsel %vm114, %v2507, 0
    %v2527 = vsel %vm114, %v2502, 0
    %2529 = vmatpush.bf16.msra.mxu0 0
    %2530 = vmatpush.bf16.msra.mxu0 0
    %2531 = vmatpush.bf16.msra.mxu0 0
    %2532 = vmatpush.bf16.msra.mxu0 0
    %2533 = vmatpush.bf16.msra.mxu0 0
    %2534 = vmatpush.bf16.msra.mxu0 0
    %2535 = vmatpush.bf16.msra.mxu0 0
    %2536 = vmatpush.bf16.msra.mxu0 %v2512
    %2537 = vmatmul.bf16.gmra.mxu0 %v2509
    %v2538 = vpop.f32.mrf.mxu0
    %v2539 = vadd.f32 0.0, %v2538
    %v2540 = vpop.f32.mrf.mxu0
    %2541 = vdwg.mxu0
    %2542 = vmatpush.bf16.msra.mxu0 0
    %2543 = vmatpush.bf16.msra.mxu0 0
    %2544 = vmatpush.bf16.msra.mxu0 0
    %2545 = vmatpush.bf16.msra.mxu0 0
    %2546 = vmatpush.bf16.msra.mxu0 0
    %2547 = vmatpush.bf16.msra.mxu0 0
    %2548 = vmatpush.bf16.msra.mxu0 0
    %2549 = vmatpush.bf16.msra.mxu0 %v2515
    %2550 = vmatmul.bf16.gmra.mxu0 %v2509
    %v2551 = vpop.f32.mrf.mxu0
    %v2552 = vadd.f32 0.0, %v2551
    %v2553 = vpop.f32.mrf.mxu0
    %2554 = vdwg.mxu0
    %2555 = vmatpush.bf16.msra.mxu0 0
    %2556 = vmatpush.bf16.msra.mxu0 0
    %2557 = vmatpush.bf16.msra.mxu0 0
    %2558 = vmatpush.bf16.msra.mxu0 0
    %2559 = vmatpush.bf16.msra.mxu0 0
    %2560 = vmatpush.bf16.msra.mxu0 0
    %2561 = vmatpush.bf16.msra.mxu0 0
    %2562 = vmatpush.bf16.msra.mxu0 %v2518
    %2563 = vmatmul.bf16.gmra.mxu0 %v2509
    %v2564 = vpop.f32.mrf.mxu0
    %v2565 = vadd.f32 0.0, %v2564
    %v2566 = vpop.f32.mrf.mxu0
    %2567 = vdwg.mxu0
    %2568 = vmatpush.bf16.msra.mxu0 0
    %2569 = vmatpush.bf16.msra.mxu0 0
    %2570 = vmatpush.bf16.msra.mxu0 0
    %2571 = vmatpush.bf16.msra.mxu0 0
    %2572 = vmatpush.bf16.msra.mxu0 0
    %2573 = vmatpush.bf16.msra.mxu0 0
    %2574 = vmatpush.bf16.msra.mxu0 0
    %2575 = vmatpush.bf16.msra.mxu0 %v2521
    %2576 = vmatmul.bf16.gmra.mxu0 %v2509
    %v2577 = vpop.f32.mrf.mxu0
    %v2578 = vadd.f32 0.0, %v2577
    %v2579 = vpop.f32.mrf.mxu0
    %2580 = vdwg.mxu0
    %2581 = vmatpush.bf16.msra.mxu0 0
    %2582 = vmatpush.bf16.msra.mxu0 0
    %2583 = vmatpush.bf16.msra.mxu0 0
    %2584 = vmatpush.bf16.msra.mxu0 0
    %2585 = vmatpush.bf16.msra.mxu0 0
    %2586 = vmatpush.bf16.msra.mxu0 0
    %2587 = vmatpush.bf16.msra.mxu0 0
    %2588 = vmatpush.bf16.msra.mxu0 %v2524
    %2589 = vmatmul.bf16.gmra.mxu0 %v2509
    %v2590 = vpop.f32.mrf.mxu0
    %v2591 = vadd.f32 0.0, %v2590
    %v2592 = vpop.f32.mrf.mxu0
    %2593 = vdwg.mxu0
    %2594 = vmatpush.bf16.msra.mxu0 0
    %2595 = vmatpush.bf16.msra.mxu0 0
    %2596 = vmatpush.bf16.msra.mxu0 0
    %2597 = vmatpush.bf16.msra.mxu0 0
    %2598 = vmatpush.bf16.msra.mxu0 0
    %2599 = vmatpush.bf16.msra.mxu0 0
    %2600 = vmatpush.bf16.msra.mxu0 0
    %2601 = vmatpush.bf16.msra.mxu0 %v2527
    %2602 = vmatmul.bf16.gmra.mxu0 %v2509
    %v2603 = vpop.f32.mrf.mxu0
    %v2604 = vadd.f32 0.0, %v2603
    %v2605 = vpop.f32.mrf.mxu0
    %2606 = vdwg.mxu0
    %v2607 = vadd.f32 %v2464, %v2539
    %v2608 = vadd.f32 %v2465, %v2552
    %v2609 = vadd.f32 %v2466, %v2565
    %v2610 = vadd.f32 %v2467, %v2578
    %v2611 = vadd.f32 %v2468, %v2591
    %v2612 = vadd.f32 %v2469, %v2604
    %s2613 = scalar_lea.vmem %s4, 16
    %v2614 = vld [vmem:[%s2613] sm:$0x3]
    %v2615 = vld [vmem:[#allocation2 + $0x2] sm:$0xff]
    %v2616 = vld [vmem:[#allocation2 + $0xa] sm:$0xf]
    %2618 = vst [vmem:[#allocation1] ss:$4 sm:$0xff] %v2615
    %s2620 = scalar_lea.vmem [#allocation1], 32
    %2621 = vst [vmem:[%s2620] ss:$4 sm:$0xff] %v2616
    %v2622 = vld.sshfl [vmem:[#allocation1] sm:$0xff pattern:$0x73625140]
    %v2624 = vld.sshfl [vmem:[#allocation1 + $0x8] sm:$0xff pattern:$0x73625140]
    %v2626 = vld.sshfl [vmem:[#allocation1 + $0x10] sm:$0xff pattern:$0x73625140]
    %v2628 = vld.sshfl [vmem:[#allocation1 + $0x18] sm:$0xff pattern:$0x73625140]
    %v2630 = vld.sshfl [vmem:[#allocation1 + $0x20] sm:$0xff pattern:$0x73625140]
    %v2632 = vld.sshfl [vmem:[#allocation1 + $0x28] sm:$0xff pattern:$0x73625140]
    %2634 = vrot.lane.b32.xlu0 %v2622, 109
    %v2635 = vpop.permute.xlu0 %2634
    %2636 = vrot.lane.b32.xlu0 %v2624, 109
    %v2637 = vpop.permute.xlu0 %2636
    %2638 = vrot.lane.b32.xlu0 %v2626, 109
    %v2639 = vpop.permute.xlu0 %2638
    %2640 = vrot.lane.b32.xlu0 %v2628, 109
    %v2641 = vpop.permute.xlu0 %2640
    %2642 = vrot.lane.b32.xlu0 %v2630, 109
    %v2643 = vpop.permute.xlu0 %2642
    %2644 = vrot.lane.b32.xlu0 %v2632, 109
    %v2645 = vpop.permute.xlu0 %2644
    %v2646 = vsel %vm1330, %v2635, %v2637
    %v2647 = vsel %vm1330, %v2637, %v2639
    %v2648 = vsel %vm1330, %v2639, %v2641
    %v2649 = vsel %vm1330, %v2641, %v2643
    %v2650 = vsel %vm1330, %v2643, %v2645
    %v2652 = vsel %vm110, %v2614, 0
    %v2655 = vsel %vm114, %v2646, 0
    %v2658 = vsel %vm114, %v2647, 0
    %v2661 = vsel %vm114, %v2648, 0
    %v2664 = vsel %vm114, %v2649, 0
    %v2667 = vsel %vm114, %v2650, 0
    %v2670 = vsel %vm114, %v2645, 0
    %2672 = vmatpush.bf16.msra.mxu0 0
    %2673 = vmatpush.bf16.msra.mxu0 0
    %2674 = vmatpush.bf16.msra.mxu0 0
    %2675 = vmatpush.bf16.msra.mxu0 0
    %2676 = vmatpush.bf16.msra.mxu0 0
    %2677 = vmatpush.bf16.msra.mxu0 0
    %2678 = vmatpush.bf16.msra.mxu0 0
    %2679 = vmatpush.bf16.msra.mxu0 %v2655
    %2680 = vmatmul.bf16.gmra.mxu0 %v2652
    %v2681 = vpop.f32.mrf.mxu0
    %v2682 = vadd.f32 0.0, %v2681
    %v2683 = vpop.f32.mrf.mxu0
    %2684 = vdwg.mxu0
    %2685 = vmatpush.bf16.msra.mxu0 0
    %2686 = vmatpush.bf16.msra.mxu0 0
    %2687 = vmatpush.bf16.msra.mxu0 0
    %2688 = vmatpush.bf16.msra.mxu0 0
    %2689 = vmatpush.bf16.msra.mxu0 0
    %2690 = vmatpush.bf16.msra.mxu0 0
    %2691 = vmatpush.bf16.msra.mxu0 0
    %2692 = vmatpush.bf16.msra.mxu0 %v2658
    %2693 = vmatmul.bf16.gmra.mxu0 %v2652
    %v2694 = vpop.f32.mrf.mxu0
    %v2695 = vadd.f32 0.0, %v2694
    %v2696 = vpop.f32.mrf.mxu0
    %2697 = vdwg.mxu0
    %2698 = vmatpush.bf16.msra.mxu0 0
    %2699 = vmatpush.bf16.msra.mxu0 0
    %2700 = vmatpush.bf16.msra.mxu0 0
    %2701 = vmatpush.bf16.msra.mxu0 0
    %2702 = vmatpush.bf16.msra.mxu0 0
    %2703 = vmatpush.bf16.msra.mxu0 0
    %2704 = vmatpush.bf16.msra.mxu0 0
    %2705 = vmatpush.bf16.msra.mxu0 %v2661
    %2706 = vmatmul.bf16.gmra.mxu0 %v2652
    %v2707 = vpop.f32.mrf.mxu0
    %v2708 = vadd.f32 0.0, %v2707
    %v2709 = vpop.f32.mrf.mxu0
    %2710 = vdwg.mxu0
    %2711 = vmatpush.bf16.msra.mxu0 0
    %2712 = vmatpush.bf16.msra.mxu0 0
    %2713 = vmatpush.bf16.msra.mxu0 0
    %2714 = vmatpush.bf16.msra.mxu0 0
    %2715 = vmatpush.bf16.msra.mxu0 0
    %2716 = vmatpush.bf16.msra.mxu0 0
    %2717 = vmatpush.bf16.msra.mxu0 0
    %2718 = vmatpush.bf16.msra.mxu0 %v2664
    %2719 = vmatmul.bf16.gmra.mxu0 %v2652
    %v2720 = vpop.f32.mrf.mxu0
    %v2721 = vadd.f32 0.0, %v2720
    %v2722 = vpop.f32.mrf.mxu0
    %2723 = vdwg.mxu0
    %2724 = vmatpush.bf16.msra.mxu0 0
    %2725 = vmatpush.bf16.msra.mxu0 0
    %2726 = vmatpush.bf16.msra.mxu0 0
    %2727 = vmatpush.bf16.msra.mxu0 0
    %2728 = vmatpush.bf16.msra.mxu0 0
    %2729 = vmatpush.bf16.msra.mxu0 0
    %2730 = vmatpush.bf16.msra.mxu0 0
    %2731 = vmatpush.bf16.msra.mxu0 %v2667
    %2732 = vmatmul.bf16.gmra.mxu0 %v2652
    %v2733 = vpop.f32.mrf.mxu0
    %v2734 = vadd.f32 0.0, %v2733
    %v2735 = vpop.f32.mrf.mxu0
    %2736 = vdwg.mxu0
    %2737 = vmatpush.bf16.msra.mxu0 0
    %2738 = vmatpush.bf16.msra.mxu0 0
    %2739 = vmatpush.bf16.msra.mxu0 0
    %2740 = vmatpush.bf16.msra.mxu0 0
    %2741 = vmatpush.bf16.msra.mxu0 0
    %2742 = vmatpush.bf16.msra.mxu0 0
    %2743 = vmatpush.bf16.msra.mxu0 0
    %2744 = vmatpush.bf16.msra.mxu0 %v2670
    %2745 = vmatmul.bf16.gmra.mxu0 %v2652
    %v2746 = vpop.f32.mrf.mxu0
    %v2747 = vadd.f32 0.0, %v2746
    %v2748 = vpop.f32.mrf.mxu0
    %2749 = vdwg.mxu0
    %v2750 = vadd.f32 %v2607, %v2682
    %v2751 = vadd.f32 %v2608, %v2695
    %v2752 = vadd.f32 %v2609, %v2708
    %v2753 = vadd.f32 %v2610, %v2721
    %v2754 = vadd.f32 %v2611, %v2734
    %v2755 = vadd.f32 %v2612, %v2747
    %v2756 = vld [vmem:[%s5] sm:$0xf]
    %2758 = vset.pattern.permute.xlu0 0
    %2759 = vperm.xlu0 %2758, %v2756
    %v2760 = vpop.permute.xlu0 %2759
    %v2762 = vadd.f32 %v2750, %v2760
    %v2763 = vadd.f32 %v2751, %v2760
    %v2764 = vadd.f32 %v2752, %v2760
    %v2765 = vadd.f32 %v2753, %v2760
    %v2766 = vadd.f32 %v2754, %v2760
    %v2767 = vadd.f32 %v2755, %v2760
    %v2768 = vld [vmem:[%s1 + $0x4] sm:$0xff]
    %v2769 = vld [vmem:[%s1 + $0xc] sm:$0xff]
    %v2770 = vld [vmem:[%s1 + $0x14] sm:$0xff]
    %2774 = vst [vmem:[#allocation1] ss:$2 sm:$0xff] %v2768
    %s2775 = scalar_lea.vmem [#allocation1], 16
    %2776 = vst [vmem:[%s2775] ss:$2 sm:$0xff] %v2769
    %s2777 = scalar_lea.vmem [#allocation1], 32
    %2778 = vst [vmem:[%s2777] ss:$2 sm:$0xff] %v2770
    %v2779 = vld.sshfl [vmem:[#allocation1] sm:$0xff pattern:$0x75316420]
    %v2780 = vld.sshfl [vmem:[#allocation1 + $0x8] sm:$0xff pattern:$0x75316420]
    %v2781 = vld.sshfl [vmem:[#allocation1 + $0x10] sm:$0xff pattern:$0x75316420]
    %v2782 = vld.sshfl [vmem:[#allocation1 + $0x18] sm:$0xff pattern:$0x75316420]
    %v2783 = vld.sshfl [vmem:[#allocation1 + $0x20] sm:$0xff pattern:$0x75316420]
    %v2784 = vld.sshfl [vmem:[#allocation1 + $0x28] sm:$0xff pattern:$0x75316420]
    %v2791 = vadd.f32 %v2762, %v2779
    %v2792 = vadd.f32 %v2763, %v2780
    %v2793 = vadd.f32 %v2764, %v2781
    %v2794 = vadd.f32 %v2765, %v2782
    %v2795 = vadd.f32 %v2766, %v2783
    %v2796 = vadd.f32 %v2767, %v2784
    %v2797 = vmax.f32 %v2791, 0.0
    %v2798 = vmax.f32 %v2792, 0.0
    %v2799 = vmax.f32 %v2793, 0.0
    %v2800 = vmax.f32 %v2794, 0.0
    %v2801 = vmax.f32 %v2795, 0.0
    %v2802 = vmax.f32 %v2796, 0.0
    %v2809 = vrot.slane %v2798, 4
    %v2810 = vrot.slane %v2800, 4
    %v2811 = vrot.slane %v2802, 4
    %v2812 = vsel %vm1499, %v2797, %v2809
    %v2813 = vsel %vm1499, %v2799, %v2810
    %v2814 = vsel %vm1499, %v2801, %v2811
    %2818 = vst [vmem:[#allocation3] sm:$0xff] %v2812
    %2819 = vst [vmem:[#allocation3 + $0x8] sm:$0xff] %v2813
    %vm2820 = vcmask 64516
    %vm2821 = vmor %vm2820, %vm1499
    %2822 = vst.msk [vmem:[#allocation3 + $0x10] sm:$0xff] %vm2821, %v2814
    // Predicated region
    $region26: #{tpu_custom_call.1} parent=1 // pred_check
      _
    $region27: #{tpu_custom_call.1} parent=1 // pred_check_branch
      %2824 = sbr.rel (0) target = $region29
    $region28: #{tpu_custom_call.1} parent=1 // pred_region
      %2826 = vsyncadd [#allocation4], 0
      %s2828 = sshll.u32 [#allocation3], 4
      %s2829 = int_to_ptr.vmem [resolvable:$true] %s2828
      %s2830 = sshll.u32 %s6, 4
      %s2831 = int_to_ptr.hbm [resolvable:$true] %s2830
      %2833 = dma.vmem_to_hbm [thread:$0]  %s2829, 384, %s2831, [#allocation4]
    $region29: #{tpu_custom_call.1} parent=1 // pred_fallthru
      _
    // Predicated region
    $region30: #{tpu_custom_call.1} parent=1 // pred_check
      _
    $region31: #{tpu_custom_call.1} parent=1 // pred_check_branch
      %2835 = sbr.rel (0) target = $region33
    $region32: #{tpu_custom_call.1} parent=1 // pred_region
      %2837 = dma.done [#allocation4], 384
    $region33: #{tpu_custom_call.1} parent=1 // pred_fallthru
      _
    %2838 = vsyncpa [#allocation4], 1

</llo_original>
